<compile_context>
chip_gen: v7x
topology: tpu7x:2x2x1
jax: 0.10.0
libtpu: 0.0.40
codegen_flags: <defaults>
</compile_context>

<pallas_src>
import functools

import jax
import jax.numpy as jnp
from jax.experimental import pallas as pl
from jax.experimental.pallas import tpu as pltpu

LANE = 128  # lane width: pad every feature dim AND the node dim to this


def _round_up(v, m):
    return (v + m - 1) // m * m


def _mish_fast(x):
    # mish(x) = x * tanh(softplus(x)).  With t = e^x (clamped):
    #   tanh(softplus(x)) = t*(t+2) / (t*(t+2) + 2)
    # -> one EUP transcendental instead of three.  For x > 20, mish(x) ~= x.
    t = jnp.exp(jnp.minimum(x, 20.0))
    u = t * (t + 2.0)
    y = x * (u / (u + 2.0))
    return jnp.where(x > 20.0, x, y)


def _mish_ref(x):
    # reference formulation (overflow-safe softplus), used only for checking
    return x * jnp.tanh(jax.nn.softplus(x))


def _gcn_fused_kernel(x_ref, adj_ref, w_ref, b_ref, out_ref, *,
                      num_layers, compute_dtype):
    """Entire GCN forward in one kernel.

    x_ref  : (N_pad, LANE)       node features, zero-padded
    adj_ref: (N_pad, N_pad)      row-normalized adjacency, zero-padded
    w_ref  : (L, LANE, LANE)     per-layer weights, zero-padded
    b_ref  : (L, 1, LANE)        per-layer biases, zero-padded
    out_ref: (N_pad, LANE)       lane-dense output slab (valid cols = n_classes)
    """
    adj = adj_ref[...].astype(compute_dtype)   # read adj ONCE, reuse all layers
    h = x_ref[...]
    for l in range(num_layers):                 # static unroll, L = 4
        # support = h @ W_l        -> (N_pad, LANE), f32 accumulation on MXU
        support = jnp.dot(h.astype(compute_dtype),
                          w_ref[l].astype(compute_dtype),
                          preferred_element_type=jnp.float32)
        # out = adj @ support + b  -> (N_pad, LANE)
        out = jnp.dot(adj, support.astype(compute_dtype),
                      preferred_element_type=jnp.float32)
        out = out + b_ref[l]                    # (1, LANE) broadcasts
        if l < num_layers - 1:
            out = _mish_fast(out)               # hidden layers only
        h = out
    out_ref[...] = h.astype(out_ref.dtype)


def pack_gcn_params(params):
    """Pack per-layer (W, b) into padded slabs ONCE (hoisted out of forward)."""
    num_layers = len(params)
    w_stack = jnp.zeros((num_layers, LANE, LANE), jnp.float32)
    b_stack = jnp.zeros((num_layers, 1, LANE), jnp.float32)
    for l, (w, b) in enumerate(params):
        d_in, d_out = w.shape
        assert d_in <= LANE and d_out <= LANE
        w_stack = w_stack.at[l, :d_in, :d_out].set(w.astype(jnp.float32))
        b_stack = b_stack.at[l, 0, :d_out].set(b.astype(jnp.float32))
    return w_stack, b_stack


@functools.partial(jax.jit, static_argnames=("n_classes", "use_bf16"))
def gcn_forward(x, adj, w_stack, b_stack, *, n_classes, use_bf16=False):
    """Full GCN forward: hidden GraphConvolution layers (mish) + linear out."""
    n, f_in = x.shape
    num_layers = w_stack.shape[0]
    assert f_in <= LANE and n_classes <= LANE

    # Pad node dim to a full multiple of 128 lanes: adj becomes lane-dense and
    # the adj@support matmul gets a full-depth K on the MXU.  Zero padding is
    # exact: padded adj rows/cols are zero, so padded rows never contaminate
    # valid rows, and padded feature cols stay zero through W/b/mish.
    n_pad = max(LANE, _round_up(n, LANE))
    x_pad = jnp.zeros((n_pad, LANE), jnp.float32).at[:n, :f_in].set(
        x.astype(jnp.float32))
    adj_pad = jnp.zeros((n_pad, n_pad), jnp.float32).at[:n, :n].set(
        adj.astype(jnp.float32))

    # bf16 MXU operands: recommended on v6e/v7x for large N (halves adj VMEM,
    # full-rate MXU); off by default to preserve the 1e-4 f32 reference check.
    compute_dtype = jnp.bfloat16 if use_bf16 else jnp.float32

    # Explicit scoped-VMEM limit (matters first on v5e's 16 MiB default).
    resident_bytes = 4 * (x_pad.size + adj_pad.size + w_stack.size
                          + b_stack.size + n_pad * LANE)
    vmem_limit = int(min(64 << 20, max(32 << 20, 2 * resident_bytes)))

    kernel = functools.partial(_gcn_fused_kernel,
                               num_layers=num_layers,
                               compute_dtype=compute_dtype)
    out_pad = pl.pallas_call(
        kernel,
        out_shape=jax.ShapeDtypeStruct((n_pad, LANE), jnp.float32),
        in_specs=[
            pl.BlockSpec(memory_space=pltpu.MemorySpace.VMEM),  # x
            pl.BlockSpec(memory_space=pltpu.MemorySpace.VMEM),  # adj
            pl.BlockSpec(memory_space=pltpu.MemorySpace.VMEM),  # packed W
            pl.BlockSpec(memory_space=pltpu.MemorySpace.VMEM),  # packed bias
        ],
        out_specs=pl.BlockSpec(memory_space=pltpu.MemorySpace.VMEM),
        compiler_params=pltpu.CompilerParams(vmem_limit_bytes=vmem_limit),
    )(x_pad, adj_pad, w_stack, b_stack)

    # Slice the lane-dense slab back to the logical result.
    return out_pad[:n, :n_classes]


def init_gcn_params(key, f_in, n_classes, hidden):
    """Parameter init mirroring GraphConvolution.__init__ shapes.

    Hidden layers: kaiming-uniform-like init (activation != None).
    Output layer:  xavier-uniform-like init (activation is None).
    Biases: zeros.
    """
    params = []
    dims_in = [f_in] + hidden[:-1]
    dims_out = hidden
    for d_in, d_out in zip(dims_in, dims_out):
        key, sub = jax.random.split(key)
        bound = (6.0 / d_in) ** 0.5  # kaiming-uniform style bound
        w = jax.random.uniform(sub, (d_in, d_out), jnp.float32, -bound, bound)
        b = jnp.zeros((d_out,), jnp.float32)
        params.append((w, b))
    # output layer
    d_in, d_out = hidden[-1], n_classes
    key, sub = jax.random.split(key)
    bound = (6.0 / (d_in + d_out)) ** 0.5  # xavier-uniform bound
    w = jax.random.uniform(sub, (d_in, d_out), jnp.float32, -bound, bound)
    b = jnp.zeros((d_out,), jnp.float32)
    params.append((w, b))
    return params


if __name__ == "__main__":
    key = jax.random.PRNGKey(0)

    n_nodes = 32
    n_features = 8
    hidden = [16, 32, 16]
    n_classes = 4

    k_feat, k_adj, k_param = jax.random.split(key, 3)

    # node features [N, F]
    features = jax.random.normal(k_feat, (n_nodes, n_features), jnp.float32)

    # symmetric adjacency with self-loops, row-normalized (typical GCN input)
    a = (jax.random.uniform(k_adj, (n_nodes, n_nodes)) < 0.2).astype(jnp.float32)
    a = jnp.maximum(a, a.T) + jnp.eye(n_nodes, dtype=jnp.float32)
    adj = a / jnp.sum(a, axis=1, keepdims=True)

    params = init_gcn_params(k_param, n_features, n_classes, hidden)
    # Pack/pad weights ONCE (outside the jitted per-call path).
    w_stack, b_stack = pack_gcn_params(params)

    # TODO(synk): F.dropout(p=0.5, training=True) before the output layer is
    # omitted (inference/identity semantics); stochastic dropout would need
    # pltpu.prng_seed / pltpu.prng_random_bits inside the fused kernel.
    out = gcn_forward(features, adj, w_stack, b_stack, n_classes=n_classes)
    jax.block_until_ready(out)

    # reference check in plain JAX (f32, overflow-safe softplus mish)
    xr = features
    for w, b in params[:-1]:
        xr = _mish_ref(adj @ (xr @ w) + b)
    w, b = params[-1]
    ref = adj @ (xr @ w) + b
    assert out.shape == (n_nodes, n_classes)
    assert jnp.allclose(out, ref, atol=1e-4, rtol=1e-4)

    print("KERNEL_OK")
</pallas_src>

<mosaic_0001>
module attributes {stable_mosaic.version = 11 : i64} {
  func.func @_gcn_fused_kernel(%arg0: memref<128x128xf32, #tpu.memory_space<vmem>>, %arg1: memref<128x128xf32, #tpu.memory_space<vmem>>, %arg2: memref<4x128x128xf32, #tpu.memory_space<vmem>>, %arg3: memref<4x1x128xf32, #tpu.memory_space<vmem>>, %arg4: memref<128x128xf32, #tpu.memory_space<vmem>>) attributes {dimension_semantics = [], scalar_prefetch = 0 : i64, scratch_operands = 0 : i64, tpu.core_type = #tpu.core_type<tc>} {
    %c0 = arith.constant 0 : index
    %c0_0 = arith.constant 0 : index
    %0 = vector.load %arg1[%c0, %c0_0] : memref<128x128xf32, #tpu.memory_space<vmem>>, vector<128x128xf32>
    %c0_1 = arith.constant 0 : index
    %c0_2 = arith.constant 0 : index
    %1 = vector.load %arg0[%c0_1, %c0_2] : memref<128x128xf32, #tpu.memory_space<vmem>>, vector<128x128xf32>
    %c0_3 = arith.constant 0 : index
    %c0_4 = arith.constant 0 : index
    %c0_5 = arith.constant 0 : index
    %2 = vector.load %arg2[%c0_3, %c0_4, %c0_5] : memref<4x128x128xf32, #tpu.memory_space<vmem>>, vector<1x128x128xf32>
    %3 = vector.shape_cast %2 : vector<1x128x128xf32> to vector<128x128xf32>
    %cst = arith.constant dense<0.000000e+00> : vector<128x128xf32>
    %4 = tpu.matmul %1, %3, %cst {dimension_numbers = #tpu.dot_dimension_numbers<[1], [0], [0], [1], [0, 0, 1, 1], [], []>} : vector<128x128xf32>, vector<128x128xf32>, vector<128x128xf32> -> vector<128x128xf32>
    %cst_6 = arith.constant dense<0.000000e+00> : vector<128x128xf32>
    %5 = tpu.matmul %0, %4, %cst_6 {dimension_numbers = #tpu.dot_dimension_numbers<[1], [0], [0], [1], [0, 0, 1, 1], [], []>} : vector<128x128xf32>, vector<128x128xf32>, vector<128x128xf32> -> vector<128x128xf32>
    %c0_7 = arith.constant 0 : index
    %c0_8 = arith.constant 0 : index
    %c0_9 = arith.constant 0 : index
    %6 = vector.load %arg3[%c0_7, %c0_8, %c0_9] : memref<4x1x128xf32, #tpu.memory_space<vmem>>, vector<1x1x128xf32>
    %7 = vector.shape_cast %6 : vector<1x1x128xf32> to vector<1x128xf32>
    %8 = vector.broadcast %7 : vector<1x128xf32> to vector<128x128xf32>
    %9 = arith.addf %5, %8 : vector<128x128xf32>
    %cst_10 = arith.constant 2.000000e+01 : f32
    %10 = vector.broadcast %cst_10 : f32 to vector<128x128xf32>
    %11 = arith.minimumf %9, %10 : vector<128x128xf32>
    %12 = math.exp %11 : vector<128x128xf32>
    %cst_11 = arith.constant 2.000000e+00 : f32
    %13 = vector.broadcast %cst_11 : f32 to vector<128x128xf32>
    %14 = arith.addf %12, %13 : vector<128x128xf32>
    %15 = arith.mulf %12, %14 : vector<128x128xf32>
    %cst_12 = arith.constant 2.000000e+00 : f32
    %16 = vector.broadcast %cst_12 : f32 to vector<128x128xf32>
    %17 = arith.addf %15, %16 : vector<128x128xf32>
    %18 = arith.divf %15, %17 : vector<128x128xf32>
    %19 = arith.mulf %9, %18 : vector<128x128xf32>
    %cst_13 = arith.constant 2.000000e+01 : f32
    %20 = vector.broadcast %cst_13 : f32 to vector<128x128xf32>
    %21 = arith.cmpf ogt, %9, %20 : vector<128x128xf32>
    %22 = arith.select %21, %9, %19 : vector<128x128xi1>, vector<128x128xf32>
    %c1 = arith.constant 1 : index
    %c0_14 = arith.constant 0 : index
    %c0_15 = arith.constant 0 : index
    %23 = vector.load %arg2[%c1, %c0_14, %c0_15] : memref<4x128x128xf32, #tpu.memory_space<vmem>>, vector<1x128x128xf32>
    %24 = vector.shape_cast %23 : vector<1x128x128xf32> to vector<128x128xf32>
    %cst_16 = arith.constant dense<0.000000e+00> : vector<128x128xf32>
    %25 = tpu.matmul %22, %24, %cst_16 {dimension_numbers = #tpu.dot_dimension_numbers<[1], [0], [0], [1], [0, 0, 1, 1], [], []>} : vector<128x128xf32>, vector<128x128xf32>, vector<128x128xf32> -> vector<128x128xf32>
    %cst_17 = arith.constant dense<0.000000e+00> : vector<128x128xf32>
    %26 = tpu.matmul %0, %25, %cst_17 {dimension_numbers = #tpu.dot_dimension_numbers<[1], [0], [0], [1], [0, 0, 1, 1], [], []>} : vector<128x128xf32>, vector<128x128xf32>, vector<128x128xf32> -> vector<128x128xf32>
    %c1_18 = arith.constant 1 : index
    %c0_19 = arith.constant 0 : index
    %c0_20 = arith.constant 0 : index
    %27 = vector.load %arg3[%c1_18, %c0_19, %c0_20] : memref<4x1x128xf32, #tpu.memory_space<vmem>>, vector<1x1x128xf32>
    %28 = vector.shape_cast %27 : vector<1x1x128xf32> to vector<1x128xf32>
    %29 = vector.broadcast %28 : vector<1x128xf32> to vector<128x128xf32>
    %30 = arith.addf %26, %29 : vector<128x128xf32>
    %cst_21 = arith.constant 2.000000e+01 : f32
    %31 = vector.broadcast %cst_21 : f32 to vector<128x128xf32>
    %32 = arith.minimumf %30, %31 : vector<128x128xf32>
    %33 = math.exp %32 : vector<128x128xf32>
    %cst_22 = arith.constant 2.000000e+00 : f32
    %34 = vector.broadcast %cst_22 : f32 to vector<128x128xf32>
    %35 = arith.addf %33, %34 : vector<128x128xf32>
    %36 = arith.mulf %33, %35 : vector<128x128xf32>
    %cst_23 = arith.constant 2.000000e+00 : f32
    %37 = vector.broadcast %cst_23 : f32 to vector<128x128xf32>
    %38 = arith.addf %36, %37 : vector<128x128xf32>
    %39 = arith.divf %36, %38 : vector<128x128xf32>
    %40 = arith.mulf %30, %39 : vector<128x128xf32>
    %cst_24 = arith.constant 2.000000e+01 : f32
    %41 = vector.broadcast %cst_24 : f32 to vector<128x128xf32>
    %42 = arith.cmpf ogt, %30, %41 : vector<128x128xf32>
    %43 = arith.select %42, %30, %40 : vector<128x128xi1>, vector<128x128xf32>
    %c2 = arith.constant 2 : index
    %c0_25 = arith.constant 0 : index
    %c0_26 = arith.constant 0 : index
    %44 = vector.load %arg2[%c2, %c0_25, %c0_26] : memref<4x128x128xf32, #tpu.memory_space<vmem>>, vector<1x128x128xf32>
    %45 = vector.shape_cast %44 : vector<1x128x128xf32> to vector<128x128xf32>
    %cst_27 = arith.constant dense<0.000000e+00> : vector<128x128xf32>
    %46 = tpu.matmul %43, %45, %cst_27 {dimension_numbers = #tpu.dot_dimension_numbers<[1], [0], [0], [1], [0, 0, 1, 1], [], []>} : vector<128x128xf32>, vector<128x128xf32>, vector<128x128xf32> -> vector<128x128xf32>
    %cst_28 = arith.constant dense<0.000000e+00> : vector<128x128xf32>
    %47 = tpu.matmul %0, %46, %cst_28 {dimension_numbers = #tpu.dot_dimension_numbers<[1], [0], [0], [1], [0, 0, 1, 1], [], []>} : vector<128x128xf32>, vector<128x128xf32>, vector<128x128xf32> -> vector<128x128xf32>
    %c2_29 = arith.constant 2 : index
    %c0_30 = arith.constant 0 : index
    %c0_31 = arith.constant 0 : index
    %48 = vector.load %arg3[%c2_29, %c0_30, %c0_31] : memref<4x1x128xf32, #tpu.memory_space<vmem>>, vector<1x1x128xf32>
    %49 = vector.shape_cast %48 : vector<1x1x128xf32> to vector<1x128xf32>
    %50 = vector.broadcast %49 : vector<1x128xf32> to vector<128x128xf32>
    %51 = arith.addf %47, %50 : vector<128x128xf32>
    %cst_32 = arith.constant 2.000000e+01 : f32
    %52 = vector.broadcast %cst_32 : f32 to vector<128x128xf32>
    %53 = arith.minimumf %51, %52 : vector<128x128xf32>
    %54 = math.exp %53 : vector<128x128xf32>
    %cst_33 = arith.constant 2.000000e+00 : f32
    %55 = vector.broadcast %cst_33 : f32 to vector<128x128xf32>
    %56 = arith.addf %54, %55 : vector<128x128xf32>
    %57 = arith.mulf %54, %56 : vector<128x128xf32>
    %cst_34 = arith.constant 2.000000e+00 : f32
    %58 = vector.broadcast %cst_34 : f32 to vector<128x128xf32>
    %59 = arith.addf %57, %58 : vector<128x128xf32>
    %60 = arith.divf %57, %59 : vector<128x128xf32>
    %61 = arith.mulf %51, %60 : vector<128x128xf32>
    %cst_35 = arith.constant 2.000000e+01 : f32
    %62 = vector.broadcast %cst_35 : f32 to vector<128x128xf32>
    %63 = arith.cmpf ogt, %51, %62 : vector<128x128xf32>
    %64 = arith.select %63, %51, %61 : vector<128x128xi1>, vector<128x128xf32>
    %c3 = arith.constant 3 : index
    %c0_36 = arith.constant 0 : index
    %c0_37 = arith.constant 0 : index
    %65 = vector.load %arg2[%c3, %c0_36, %c0_37] : memref<4x128x128xf32, #tpu.memory_space<vmem>>, vector<1x128x128xf32>
    %66 = vector.shape_cast %65 : vector<1x128x128xf32> to vector<128x128xf32>
    %cst_38 = arith.constant dense<0.000000e+00> : vector<128x128xf32>
    %67 = tpu.matmul %64, %66, %cst_38 {dimension_numbers = #tpu.dot_dimension_numbers<[1], [0], [0], [1], [0, 0, 1, 1], [], []>} : vector<128x128xf32>, vector<128x128xf32>, vector<128x128xf32> -> vector<128x128xf32>
    %cst_39 = arith.constant dense<0.000000e+00> : vector<128x128xf32>
    %68 = tpu.matmul %0, %67, %cst_39 {dimension_numbers = #tpu.dot_dimension_numbers<[1], [0], [0], [1], [0, 0, 1, 1], [], []>} : vector<128x128xf32>, vector<128x128xf32>, vector<128x128xf32> -> vector<128x128xf32>
    %c3_40 = arith.constant 3 : index
    %c0_41 = arith.constant 0 : index
    %c0_42 = arith.constant 0 : index
    %69 = vector.load %arg3[%c3_40, %c0_41, %c0_42] : memref<4x1x128xf32, #tpu.memory_space<vmem>>, vector<1x1x128xf32>
    %70 = vector.shape_cast %69 : vector<1x1x128xf32> to vector<1x128xf32>
    %71 = vector.broadcast %70 : vector<1x128xf32> to vector<128x128xf32>
    %72 = arith.addf %68, %71 : vector<128x128xf32>
    %c0_43 = arith.constant 0 : index
    %c0_44 = arith.constant 0 : index
    %73 = vector.load %arg4[%c0_43, %c0_44] : memref<128x128xf32, #tpu.memory_space<vmem>>, vector<128x128xf32>
    tpu.vector_store %arg4[%c0_43, %c0_44], %72 {strides = array<i32>} : memref<128x128xf32, #tpu.memory_space<vmem>>, vector<128x128xf32>,
    return
  }
}

</mosaic_0001>

<llo_original>
// kernel: gcn_forward.1
$region0: #{gcn_forward.1}
  #allocation0 [shape = 'u32[]', space=smem, size = 0x4, offset = 0x4, fixed_abs, tag = 'smem constant byte address 0x4 - core index']
  #allocation1 [shape = 'u32[144,128]{1,0:T(1,128)}', space=vmem, size = 0x12000, scoped, tag = 'internal scratch']
  %s0 = inlined_call_operand.vmem [shape: f32[128,128], index: 0, kind: input, shape index: {}]
  %s1 = inlined_call_operand.vmem [shape: f32[128,128], index: 1, kind: input, shape index: {}]
  %s2 = inlined_call_operand.hbm [shape: f32[4,128,128], index: 2, kind: input, shape index: {}]
  %s3 = inlined_call_operand.vmem [shape: f32[4,1,128], index: 3, kind: input, shape index: {}]
  %s4 = inlined_call_operand.vmem [shape: f32[128,128], index: 4, kind: output, shape index: {}]
  %s5 = sld [smem:[#allocation0]]
  $region30: #{gcn_forward.1} parent=0
    _
  %s7 = ssub.s32 1, %s5
  %s8 = scalar_select 0, %s7, %s5
  $region1: #{gcn_forward.1} parent=0
    #allocation2 [shape = 'u8[262144]{0}', space=vmem, size = 0x40000, scoped, tag = 'input window, operand 2, single buffered']
    #allocation3 [shape = 's32[1]{0}', space=sflag, size = 0x4, scoped, tag = 'scoped memory for gcn_forward.1']
    %9 = vsyncpa [#allocation3], 0
    // Predicated region
    $region2: #{gcn_forward.1} parent=1 // pred_check
      _
    $region3: #{gcn_forward.1} parent=1 // pred_check_branch
      %11 = sbr.rel (0) target = $region5
    $region4: #{gcn_forward.1} parent=1 // pred_region
      _
    $region5: #{gcn_forward.1} parent=1 // pred_fallthru
      _
    // Predicated region
    $region6: #{gcn_forward.1} parent=1 // pred_check
      _
    $region7: #{gcn_forward.1} parent=1 // pred_check_branch
      %13 = sbr.rel (0) target = $region9
    $region8: #{gcn_forward.1} parent=1 // pred_region
      _
    $region9: #{gcn_forward.1} parent=1 // pred_fallthru
      _
    // Predicated region
    $region10: #{gcn_forward.1} parent=1 // pred_check
      _
    $region11: #{gcn_forward.1} parent=1 // pred_check_branch
      %15 = sbr.rel (0) target = $region13
    $region12: #{gcn_forward.1} parent=1 // pred_region
      %s17 = ssub.s32 8192, 8192
      %18 = vsyncadd [#allocation3], %s17
      %s19 = sshll.u32 [#allocation2], 4
      %s20 = int_to_ptr.vmem [resolvable:$true] %s19
      %25 = dma.hbm_to_vmem [thread:$0]  %s2, 8192, %s20, [#allocation3], 128, 128, 8
    $region13: #{gcn_forward.1} parent=1 // pred_fallthru
      _
    // Predicated region
    $region14: #{gcn_forward.1} parent=1 // pred_check
      _
    $region15: #{gcn_forward.1} parent=1 // pred_check_branch
      %27 = sbr.rel (0) target = $region17
    $region16: #{gcn_forward.1} parent=1 // pred_region
      _
    $region17: #{gcn_forward.1} parent=1 // pred_fallthru
      _
    // Predicated region
    $region18: #{gcn_forward.1} parent=1 // pred_check
      _
    $region19: #{gcn_forward.1} parent=1 // pred_check_branch
      %29 = sbr.rel (0) target = $region21
    $region20: #{gcn_forward.1} parent=1 // pred_region
      %30 = dma.done [#allocation3], 8192
    $region21: #{gcn_forward.1} parent=1 // pred_fallthru
      _
    %v31 = vld [vmem:[%s1] sm:$0xff]
    %v32 = vld [vmem:[%s1 + $0x8] sm:$0xff]
    %v33 = vld [vmem:[%s1 + $0x10] sm:$0xff]
    %v34 = vld [vmem:[%s1 + $0x18] sm:$0xff]
    %v35 = vld [vmem:[%s1 + $0x20] sm:$0xff]
    %v36 = vld [vmem:[%s1 + $0x28] sm:$0xff]
    %v37 = vld [vmem:[%s1 + $0x30] sm:$0xff]
    %v38 = vld [vmem:[%s1 + $0x38] sm:$0xff]
    %v39 = vld [vmem:[%s1 + $0x40] sm:$0xff]
    %v40 = vld [vmem:[%s1 + $0x48] sm:$0xff]
    %v41 = vld [vmem:[%s1 + $0x50] sm:$0xff]
    %v42 = vld [vmem:[%s1 + $0x58] sm:$0xff]
    %v43 = vld [vmem:[%s1 + $0x60] sm:$0xff]
    %v44 = vld [vmem:[%s1 + $0x68] sm:$0xff]
    %v45 = vld [vmem:[%s1 + $0x70] sm:$0xff]
    %v46 = vld [vmem:[%s1 + $0x78] sm:$0xff]
    %v47 = vld [vmem:[%s0] sm:$0xff]
    %v48 = vld [vmem:[%s0 + $0x8] sm:$0xff]
    %v49 = vld [vmem:[%s0 + $0x10] sm:$0xff]
    %v50 = vld [vmem:[%s0 + $0x18] sm:$0xff]
    %v51 = vld [vmem:[%s0 + $0x20] sm:$0xff]
    %v52 = vld [vmem:[%s0 + $0x28] sm:$0xff]
    %v53 = vld [vmem:[%s0 + $0x30] sm:$0xff]
    %v54 = vld [vmem:[%s0 + $0x38] sm:$0xff]
    %v55 = vld [vmem:[%s0 + $0x40] sm:$0xff]
    %v56 = vld [vmem:[%s0 + $0x48] sm:$0xff]
    %v57 = vld [vmem:[%s0 + $0x50] sm:$0xff]
    %v58 = vld [vmem:[%s0 + $0x58] sm:$0xff]
    %v59 = vld [vmem:[%s0 + $0x60] sm:$0xff]
    %v60 = vld [vmem:[%s0 + $0x68] sm:$0xff]
    %v61 = vld [vmem:[%s0 + $0x70] sm:$0xff]
    %v62 = vld [vmem:[%s0 + $0x78] sm:$0xff]
    %v63 = vld [vmem:[#allocation2] sm:$0xff]
    %v64 = vld [vmem:[#allocation2 + $0x8] sm:$0xff]
    %v65 = vld [vmem:[#allocation2 + $0x10] sm:$0xff]
    %v66 = vld [vmem:[#allocation2 + $0x18] sm:$0xff]
    %v67 = vld [vmem:[#allocation2 + $0x20] sm:$0xff]
    %v68 = vld [vmem:[#allocation2 + $0x28] sm:$0xff]
    %v69 = vld [vmem:[#allocation2 + $0x30] sm:$0xff]
    %v70 = vld [vmem:[#allocation2 + $0x38] sm:$0xff]
    %v71 = vld [vmem:[#allocation2 + $0x40] sm:$0xff]
    %v72 = vld [vmem:[#allocation2 + $0x48] sm:$0xff]
    %v73 = vld [vmem:[#allocation2 + $0x50] sm:$0xff]
    %v74 = vld [vmem:[#allocation2 + $0x58] sm:$0xff]
    %v75 = vld [vmem:[#allocation2 + $0x60] sm:$0xff]
    %v76 = vld [vmem:[#allocation2 + $0x68] sm:$0xff]
    %v77 = vld [vmem:[#allocation2 + $0x70] sm:$0xff]
    %v78 = vld [vmem:[#allocation2 + $0x78] sm:$0xff]
    %79 = vmatprep.subr.mxu0 0.0
    %80 = vmatpush1.msra.mxu0 %v63
    %81 = vmatprep.subr.mxu0 0.0
    %82 = vmatpush1.msra.mxu0 %v64
    %83 = vmatprep.subr.mxu0 0.0
    %84 = vmatpush1.msra.mxu0 %v65
    %85 = vmatprep.subr.mxu0 0.0
    %86 = vmatpush1.msra.mxu0 %v66
    %87 = vmatprep.subr.mxu0 0.0
    %88 = vmatpush1.msra.mxu0 %v67
    %89 = vmatprep.subr.mxu0 0.0
    %90 = vmatpush1.msra.mxu0 %v68
    %91 = vmatprep.subr.mxu0 0.0
    %92 = vmatpush1.msra.mxu0 %v69
    %93 = vmatprep.subr.mxu0 0.0
    %94 = vmatpush1.msra.mxu0 %v70
    %95 = vmatprep.subr.mxu0 0.0
    %96 = vmatpush1.msra.mxu0 %v71
    %97 = vmatprep.subr.mxu0 0.0
    %98 = vmatpush1.msra.mxu0 %v72
    %99 = vmatprep.subr.mxu0 0.0
    %100 = vmatpush1.msra.mxu0 %v73
    %101 = vmatprep.subr.mxu0 0.0
    %102 = vmatpush1.msra.mxu0 %v74
    %103 = vmatprep.subr.mxu0 0.0
    %104 = vmatpush1.msra.mxu0 %v75
    %105 = vmatprep.subr.mxu0 0.0
    %106 = vmatpush1.msra.mxu0 %v76
    %107 = vmatprep.subr.mxu0 0.0
    %108 = vmatpush1.msra.mxu0 %v77
    %109 = vmatprep.subr.mxu0 0.0
    %110 = vmatpush1.msra.mxu0 %v78
    %111 = vmatprep.subr.mxu0 0.0
    %112 = vmatpush1.msra.mxu0 0.0
    %113 = vmatprep.subr.mxu0 0.0
    %114 = vmatpush1.msra.mxu0 0.0
    %115 = vmatprep.subr.mxu0 0.0
    %116 = vmatpush1.msra.mxu0 0.0
    %117 = vmatprep.subr.mxu0 0.0
    %118 = vmatpush1.msra.mxu0 0.0
    %119 = vmatprep.subr.mxu0 0.0
    %120 = vmatpush1.msra.mxu0 0.0
    %121 = vmatprep.subr.mxu0 0.0
    %122 = vmatpush1.msra.mxu0 0.0
    %123 = vmatprep.subr.mxu0 0.0
    %124 = vmatpush1.msra.mxu0 0.0
    %125 = vmatprep.subr.mxu0 0.0
    %126 = vmatpush1.msra.mxu0 0.0
    %127 = vmatprep.subr.mxu0 0.0
    %128 = vmatpush1.msra.mxu0 0.0
    %129 = vmatprep.subr.mxu0 0.0
    %130 = vmatpush1.msra.mxu0 0.0
    %131 = vmatprep.subr.mxu0 0.0
    %132 = vmatpush1.msra.mxu0 0.0
    %133 = vmatprep.subr.mxu0 0.0
    %134 = vmatpush1.msra.mxu0 0.0
    %135 = vmatprep.subr.mxu0 0.0
    %136 = vmatpush1.msra.mxu0 0.0
    %137 = vmatprep.subr.mxu0 0.0
    %138 = vmatpush1.msra.mxu0 0.0
    %139 = vmatprep.subr.mxu0 0.0
    %140 = vmatpush1.msra.mxu0 0.0
    %141 = vmatprep.subr.mxu0 0.0
    %142 = vmatpush1.msra.mxu0 0.0
    %143 = vmatprep.mubr.f32.mxu0 0.0
    %144 = vmatmul.mubr.f32.gmra.mrb[0].mxu0 %v47
    %v145 = vpop.f32.mrb[0].mxu0
    %v146 = vadd.f32 0.0, %v145
    %v147 = vpop.f32.mrb[0].mxu0
    %148 = vmatprep.mubr.f32.mxu0 0.0
    %149 = vmatmul.mubr.f32.gmra.mrb[0].mxu0 %v48
    %v150 = vpop.f32.mrb[0].mxu0
    %v151 = vadd.f32 0.0, %v150
    %v152 = vpop.f32.mrb[0].mxu0
    %153 = vmatprep.mubr.f32.mxu0 0.0
    %154 = vmatmul.mubr.f32.gmra.mrb[0].mxu0 %v49
    %v155 = vpop.f32.mrb[0].mxu0
    %v156 = vadd.f32 0.0, %v155
    %v157 = vpop.f32.mrb[0].mxu0
    %158 = vmatprep.mubr.f32.mxu0 0.0
    %159 = vmatmul.mubr.f32.gmra.mrb[0].mxu0 %v50
    %v160 = vpop.f32.mrb[0].mxu0
    %v161 = vadd.f32 0.0, %v160
    %v162 = vpop.f32.mrb[0].mxu0
    %163 = vmatprep.mubr.f32.mxu0 0.0
    %164 = vmatmul.mubr.f32.gmra.mrb[0].mxu0 %v51
    %v165 = vpop.f32.mrb[0].mxu0
    %v166 = vadd.f32 0.0, %v165
    %v167 = vpop.f32.mrb[0].mxu0
    %168 = vmatprep.mubr.f32.mxu0 0.0
    %169 = vmatmul.mubr.f32.gmra.mrb[0].mxu0 %v52
    %v170 = vpop.f32.mrb[0].mxu0
    %v171 = vadd.f32 0.0, %v170
    %v172 = vpop.f32.mrb[0].mxu0
    %173 = vmatprep.mubr.f32.mxu0 0.0
    %174 = vmatmul.mubr.f32.gmra.mrb[0].mxu0 %v53
    %v175 = vpop.f32.mrb[0].mxu0
    %v176 = vadd.f32 0.0, %v175
    %v177 = vpop.f32.mrb[0].mxu0
    %178 = vmatprep.mubr.f32.mxu0 0.0
    %179 = vmatmul.mubr.f32.gmra.mrb[0].mxu0 %v54
    %v180 = vpop.f32.mrb[0].mxu0
    %v181 = vadd.f32 0.0, %v180
    %v182 = vpop.f32.mrb[0].mxu0
    %183 = vmatprep.mubr.f32.mxu0 0.0
    %184 = vmatmul.mubr.f32.gmra.mrb[0].mxu0 %v55
    %v185 = vpop.f32.mrb[0].mxu0
    %v186 = vadd.f32 0.0, %v185
    %v187 = vpop.f32.mrb[0].mxu0
    %188 = vmatprep.mubr.f32.mxu0 0.0
    %189 = vmatmul.mubr.f32.gmra.mrb[0].mxu0 %v56
    %v190 = vpop.f32.mrb[0].mxu0
    %v191 = vadd.f32 0.0, %v190
    %v192 = vpop.f32.mrb[0].mxu0
    %193 = vmatprep.mubr.f32.mxu0 0.0
    %194 = vmatmul.mubr.f32.gmra.mrb[0].mxu0 %v57
    %v195 = vpop.f32.mrb[0].mxu0
    %v196 = vadd.f32 0.0, %v195
    %v197 = vpop.f32.mrb[0].mxu0
    %198 = vmatprep.mubr.f32.mxu0 0.0
    %199 = vmatmul.mubr.f32.gmra.mrb[0].mxu0 %v58
    %v200 = vpop.f32.mrb[0].mxu0
    %v201 = vadd.f32 0.0, %v200
    %v202 = vpop.f32.mrb[0].mxu0
    %203 = vmatprep.mubr.f32.mxu0 0.0
    %204 = vmatmul.mubr.f32.gmra.mrb[0].mxu0 %v59
    %v205 = vpop.f32.mrb[0].mxu0
    %v206 = vadd.f32 0.0, %v205
    %v207 = vpop.f32.mrb[0].mxu0
    %208 = vmatprep.mubr.f32.mxu0 0.0
    %209 = vmatmul.mubr.f32.gmra.mrb[0].mxu0 %v60
    %v210 = vpop.f32.mrb[0].mxu0
    %v211 = vadd.f32 0.0, %v210
    %v212 = vpop.f32.mrb[0].mxu0
    %213 = vmatprep.mubr.f32.mxu0 0.0
    %214 = vmatmul.mubr.f32.gmra.mrb[0].mxu0 %v61
    %v215 = vpop.f32.mrb[0].mxu0
    %v216 = vadd.f32 0.0, %v215
    %v217 = vpop.f32.mrb[0].mxu0
    %218 = vmatprep.mubr.f32.mxu0 0.0
    %219 = vmatmul.mubr.f32.gmra.mrb[0].mxu0 %v62
    %v220 = vpop.f32.mrb[0].mxu0
    %v221 = vadd.f32 0.0, %v220
    %v222 = vpop.f32.mrb[0].mxu0
    %223 = vdwg.mxu0
    %v224 = vld [vmem:[%s3] sm:$0x1]
    %v226 = vlaneseq
    %v227 = vshrl.u32 %v226, 7
    %v228 = vsub.s32 0, %v227
    %v229 = vrot.slane %v224, %v228
    %231 = vmatprep.subr.mxu0 0.0
    %232 = vmatpush1.msra.mxu0 %v146
    %233 = vmatprep.subr.mxu0 0.0
    %234 = vmatpush1.msra.mxu0 %v151
    %235 = vmatprep.subr.mxu0 0.0
    %236 = vmatpush1.msra.mxu0 %v156
    %237 = vmatprep.subr.mxu0 0.0
    %238 = vmatpush1.msra.mxu0 %v161
    %239 = vmatprep.subr.mxu0 0.0
    %240 = vmatpush1.msra.mxu0 %v166
    %241 = vmatprep.subr.mxu0 0.0
    %242 = vmatpush1.msra.mxu0 %v171
    %243 = vmatprep.subr.mxu0 0.0
    %244 = vmatpush1.msra.mxu0 %v176
    %245 = vmatprep.subr.mxu0 0.0
    %246 = vmatpush1.msra.mxu0 %v181
    %247 = vmatprep.subr.mxu0 0.0
    %248 = vmatpush1.msra.mxu0 %v186
    %249 = vmatprep.subr.mxu0 0.0
    %250 = vmatpush1.msra.mxu0 %v191
    %251 = vmatprep.subr.mxu0 0.0
    %252 = vmatpush1.msra.mxu0 %v196
    %253 = vmatprep.subr.mxu0 0.0
    %254 = vmatpush1.msra.mxu0 %v201
    %255 = vmatprep.subr.mxu0 0.0
    %256 = vmatpush1.msra.mxu0 %v206
    %257 = vmatprep.subr.mxu0 0.0
    %258 = vmatpush1.msra.mxu0 %v211
    %259 = vmatprep.subr.mxu0 0.0
    %260 = vmatpush1.msra.mxu0 %v216
    %261 = vmatprep.subr.mxu0 0.0
    %262 = vmatpush1.msra.mxu0 %v221
    %263 = vmatprep.subr.mxu0 0.0
    %264 = vmatpush1.msra.mxu0 0.0
    %265 = vmatprep.subr.mxu0 0.0
    %266 = vmatpush1.msra.mxu0 0.0
    %267 = vmatprep.subr.mxu0 0.0
    %268 = vmatpush1.msra.mxu0 0.0
    %269 = vmatprep.subr.mxu0 0.0
    %270 = vmatpush1.msra.mxu0 0.0
    %271 = vmatprep.subr.mxu0 0.0
    %272 = vmatpush1.msra.mxu0 0.0
    %273 = vmatprep.subr.mxu0 0.0
    %274 = vmatpush1.msra.mxu0 0.0
    %275 = vmatprep.subr.mxu0 0.0
    %276 = vmatpush1.msra.mxu0 0.0
    %277 = vmatprep.subr.mxu0 0.0
    %278 = vmatpush1.msra.mxu0 0.0
    %279 = vmatprep.subr.mxu0 0.0
    %280 = vmatpush1.msra.mxu0 0.0
    %281 = vmatprep.subr.mxu0 0.0
    %282 = vmatpush1.msra.mxu0 0.0
    %283 = vmatprep.subr.mxu0 0.0
    %284 = vmatpush1.msra.mxu0 0.0
    %285 = vmatprep.subr.mxu0 0.0
    %286 = vmatpush1.msra.mxu0 0.0
    %287 = vmatprep.subr.mxu0 0.0
    %288 = vmatpush1.msra.mxu0 0.0
    %289 = vmatprep.subr.mxu0 0.0
    %290 = vmatpush1.msra.mxu0 0.0
    %291 = vmatprep.subr.mxu0 0.0
    %292 = vmatpush1.msra.mxu0 0.0
    %293 = vmatprep.subr.mxu0 0.0
    %294 = vmatpush1.msra.mxu0 0.0
    %295 = vmatprep.mubr.f32.mxu0 0.0
    %296 = vmatmul.mubr.f32.gmra.mrb[0].mxu0 %v31
    %v297 = vpop.f32.mrb[0].mxu0
    %v298 = vadd.f32 %v229, %v297
    %v299 = vpop.f32.mrb[0].mxu0
    %300 = vmatprep.mubr.f32.mxu0 0.0
    %301 = vmatmul.mubr.f32.gmra.mrb[0].mxu0 %v32
    %v302 = vpop.f32.mrb[0].mxu0
    %v303 = vadd.f32 %v229, %v302
    %v304 = vpop.f32.mrb[0].mxu0
    %305 = vmatprep.mubr.f32.mxu0 0.0
    %306 = vmatmul.mubr.f32.gmra.mrb[0].mxu0 %v33
    %v307 = vpop.f32.mrb[0].mxu0
    %v308 = vadd.f32 %v229, %v307
    %v309 = vpop.f32.mrb[0].mxu0
    %310 = vmatprep.mubr.f32.mxu0 0.0
    %311 = vmatmul.mubr.f32.gmra.mrb[0].mxu0 %v34
    %v312 = vpop.f32.mrb[0].mxu0
    %v313 = vadd.f32 %v229, %v312
    %v314 = vpop.f32.mrb[0].mxu0
    %315 = vmatprep.mubr.f32.mxu0 0.0
    %316 = vmatmul.mubr.f32.gmra.mrb[0].mxu0 %v35
    %v317 = vpop.f32.mrb[0].mxu0
    %v318 = vadd.f32 %v229, %v317
    %v319 = vpop.f32.mrb[0].mxu0
    %320 = vmatprep.mubr.f32.mxu0 0.0
    %321 = vmatmul.mubr.f32.gmra.mrb[0].mxu0 %v36
    %v322 = vpop.f32.mrb[0].mxu0
    %v323 = vadd.f32 %v229, %v322
    %v324 = vpop.f32.mrb[0].mxu0
    %325 = vmatprep.mubr.f32.mxu0 0.0
    %326 = vmatmul.mubr.f32.gmra.mrb[0].mxu0 %v37
    %v327 = vpop.f32.mrb[0].mxu0
    %v328 = vadd.f32 %v229, %v327
    %v329 = vpop.f32.mrb[0].mxu0
    %330 = vmatprep.mubr.f32.mxu0 0.0
    %331 = vmatmul.mubr.f32.gmra.mrb[0].mxu0 %v38
    %v332 = vpop.f32.mrb[0].mxu0
    %v333 = vadd.f32 %v229, %v332
    %v334 = vpop.f32.mrb[0].mxu0
    %335 = vmatprep.mubr.f32.mxu0 0.0
    %336 = vmatmul.mubr.f32.gmra.mrb[0].mxu0 %v39
    %v337 = vpop.f32.mrb[0].mxu0
    %v338 = vadd.f32 %v229, %v337
    %v339 = vpop.f32.mrb[0].mxu0
    %340 = vmatprep.mubr.f32.mxu0 0.0
    %341 = vmatmul.mubr.f32.gmra.mrb[0].mxu0 %v40
    %v342 = vpop.f32.mrb[0].mxu0
    %v343 = vadd.f32 %v229, %v342
    %v344 = vpop.f32.mrb[0].mxu0
    %345 = vmatprep.mubr.f32.mxu0 0.0
    %346 = vmatmul.mubr.f32.gmra.mrb[0].mxu0 %v41
    %v347 = vpop.f32.mrb[0].mxu0
    %v348 = vadd.f32 %v229, %v347
    %v349 = vpop.f32.mrb[0].mxu0
    %350 = vmatprep.mubr.f32.mxu0 0.0
    %351 = vmatmul.mubr.f32.gmra.mrb[0].mxu0 %v42
    %v352 = vpop.f32.mrb[0].mxu0
    %v353 = vadd.f32 %v229, %v352
    %v354 = vpop.f32.mrb[0].mxu0
    %355 = vmatprep.mubr.f32.mxu0 0.0
    %356 = vmatmul.mubr.f32.gmra.mrb[0].mxu0 %v43
    %v357 = vpop.f32.mrb[0].mxu0
    %v358 = vadd.f32 %v229, %v357
    %v359 = vpop.f32.mrb[0].mxu0
    %360 = vmatprep.mubr.f32.mxu0 0.0
    %361 = vmatmul.mubr.f32.gmra.mrb[0].mxu0 %v44
    %v362 = vpop.f32.mrb[0].mxu0
    %v363 = vadd.f32 %v229, %v362
    %v364 = vpop.f32.mrb[0].mxu0
    %365 = vmatprep.mubr.f32.mxu0 0.0
    %366 = vmatmul.mubr.f32.gmra.mrb[0].mxu0 %v45
    %v367 = vpop.f32.mrb[0].mxu0
    %v368 = vadd.f32 %v229, %v367
    %v369 = vpop.f32.mrb[0].mxu0
    %370 = vmatprep.mubr.f32.mxu0 0.0
    %371 = vmatmul.mubr.f32.gmra.mrb[0].mxu0 %v46
    %v372 = vpop.f32.mrb[0].mxu0
    %v373 = vadd.f32 %v229, %v372
    %v374 = vpop.f32.mrb[0].mxu0
    %375 = vdwg.mxu0
    %v376 = vmin.f32 %v298, 20.0
    %v377 = vmin.f32 %v303, 20.0
    %v378 = vmin.f32 %v308, 20.0
    %v379 = vmin.f32 %v313, 20.0
    %v380 = vmin.f32 %v318, 20.0
    %v381 = vmin.f32 %v323, 20.0
    %v382 = vmin.f32 %v328, 20.0
    %v383 = vmin.f32 %v333, 20.0
    %v384 = vmin.f32 %v338, 20.0
    %v385 = vmin.f32 %v343, 20.0
    %v386 = vmin.f32 %v348, 20.0
    %v387 = vmin.f32 %v353, 20.0
    %v388 = vmin.f32 %v358, 20.0
    %v389 = vmin.f32 %v363, 20.0
    %v390 = vmin.f32 %v368, 20.0
    %v391 = vmin.f32 %v373, 20.0
    %v392 = vmul.f32 %v376, 1.442695
    %v393 = vpow.pop %v392
    %v394 = vmul.f32 %v377, 1.442695
    %v395 = vpow.pop %v394
    %v396 = vmul.f32 %v378, 1.442695
    %v397 = vpow.pop %v396
    %v398 = vmul.f32 %v379, 1.442695
    %v399 = vpow.pop %v398
    %v400 = vmul.f32 %v380, 1.442695
    %v401 = vpow.pop %v400
    %v402 = vmul.f32 %v381, 1.442695
    %v403 = vpow.pop %v402
    %v404 = vmul.f32 %v382, 1.442695
    %v405 = vpow.pop %v404
    %v406 = vmul.f32 %v383, 1.442695
    %v407 = vpow.pop %v406
    %v408 = vmul.f32 %v384, 1.442695
    %v409 = vpow.pop %v408
    %v410 = vmul.f32 %v385, 1.442695
    %v411 = vpow.pop %v410
    %v412 = vmul.f32 %v386, 1.442695
    %v413 = vpow.pop %v412
    %v414 = vmul.f32 %v387, 1.442695
    %v415 = vpow.pop %v414
    %v416 = vmul.f32 %v388, 1.442695
    %v417 = vpow.pop %v416
    %v418 = vmul.f32 %v389, 1.442695
    %v419 = vpow.pop %v418
    %v420 = vmul.f32 %v390, 1.442695
    %v421 = vpow.pop %v420
    %v422 = vmul.f32 %v391, 1.442695
    %v423 = vpow.pop %v422
    %v424 = vadd.f32 %v393, 2.0
    %v425 = vadd.f32 %v395, 2.0
    %v426 = vadd.f32 %v397, 2.0
    %v427 = vadd.f32 %v399, 2.0
    %v428 = vadd.f32 %v401, 2.0
    %v429 = vadd.f32 %v403, 2.0
    %v430 = vadd.f32 %v405, 2.0
    %v431 = vadd.f32 %v407, 2.0
    %v432 = vadd.f32 %v409, 2.0
    %v433 = vadd.f32 %v411, 2.0
    %v434 = vadd.f32 %v413, 2.0
    %v435 = vadd.f32 %v415, 2.0
    %v436 = vadd.f32 %v417, 2.0
    %v437 = vadd.f32 %v419, 2.0
    %v438 = vadd.f32 %v421, 2.0
    %v439 = vadd.f32 %v423, 2.0
    %v440 = vmul.f32 %v393, %v424
    %v441 = vmul.f32 %v395, %v425
    %v442 = vmul.f32 %v397, %v426
    %v443 = vmul.f32 %v399, %v427
    %v444 = vmul.f32 %v401, %v428
    %v445 = vmul.f32 %v403, %v429
    %v446 = vmul.f32 %v405, %v430
    %v447 = vmul.f32 %v407, %v431
    %v448 = vmul.f32 %v409, %v432
    %v449 = vmul.f32 %v411, %v433
    %v450 = vmul.f32 %v413, %v434
    %v451 = vmul.f32 %v415, %v435
    %v452 = vmul.f32 %v417, %v436
    %v453 = vmul.f32 %v419, %v437
    %v454 = vmul.f32 %v421, %v438
    %v455 = vmul.f32 %v423, %v439
    %v456 = vadd.f32 %v440, 2.0
    %v457 = vadd.f32 %v441, 2.0
    %v458 = vadd.f32 %v442, 2.0
    %v459 = vadd.f32 %v443, 2.0
    %v460 = vadd.f32 %v444, 2.0
    %v461 = vadd.f32 %v445, 2.0
    %v462 = vadd.f32 %v446, 2.0
    %v463 = vadd.f32 %v447, 2.0
    %v464 = vadd.f32 %v448, 2.0
    %v465 = vadd.f32 %v449, 2.0
    %v466 = vadd.f32 %v450, 2.0
    %v467 = vadd.f32 %v451, 2.0
    %v468 = vadd.f32 %v452, 2.0
    %v469 = vadd.f32 %v453, 2.0
    %v470 = vadd.f32 %v454, 2.0
    %v471 = vadd.f32 %v455, 2.0
    %v472 = vrcp.pop %v456
    %v473 = vmul.f32 %v440, %v472
    %v474 = vrcp.pop %v457
    %v475 = vmul.f32 %v441, %v474
    %v476 = vrcp.pop %v458
    %v477 = vmul.f32 %v442, %v476
    %v478 = vrcp.pop %v459
    %v479 = vmul.f32 %v443, %v478
    %v480 = vrcp.pop %v460
    %v481 = vmul.f32 %v444, %v480
    %v482 = vrcp.pop %v461
    %v483 = vmul.f32 %v445, %v482
    %v484 = vrcp.pop %v462
    %v485 = vmul.f32 %v446, %v484
    %v486 = vrcp.pop %v463
    %v487 = vmul.f32 %v447, %v486
    %v488 = vrcp.pop %v464
    %v489 = vmul.f32 %v448, %v488
    %v490 = vrcp.pop %v465
    %v491 = vmul.f32 %v449, %v490
    %v492 = vrcp.pop %v466
    %v493 = vmul.f32 %v450, %v492
    %v494 = vrcp.pop %v467
    %v495 = vmul.f32 %v451, %v494
    %v496 = vrcp.pop %v468
    %v497 = vmul.f32 %v452, %v496
    %v498 = vrcp.pop %v469
    %v499 = vmul.f32 %v453, %v498
    %v500 = vrcp.pop %v470
    %v501 = vmul.f32 %v454, %v500
    %v502 = vrcp.pop %v471
    %v503 = vmul.f32 %v455, %v502
    %v504 = vmul.f32 %v298, %v473
    %v505 = vmul.f32 %v303, %v475
    %v506 = vmul.f32 %v308, %v477
    %v507 = vmul.f32 %v313, %v479
    %v508 = vmul.f32 %v318, %v481
    %v509 = vmul.f32 %v323, %v483
    %v510 = vmul.f32 %v328, %v485
    %v511 = vmul.f32 %v333, %v487
    %v512 = vmul.f32 %v338, %v489
    %v513 = vmul.f32 %v343, %v491
    %v514 = vmul.f32 %v348, %v493
    %v515 = vmul.f32 %v353, %v495
    %v516 = vmul.f32 %v358, %v497
    %v517 = vmul.f32 %v363, %v499
    %v518 = vmul.f32 %v368, %v501
    %v519 = vmul.f32 %v373, %v503
    %vm520 = vcmp.gt.f32.partialorder %v298, 20.0
    %vm521 = vcmp.gt.f32.partialorder %v303, 20.0
    %vm522 = vcmp.gt.f32.partialorder %v308, 20.0
    %vm523 = vcmp.gt.f32.partialorder %v313, 20.0
    %vm524 = vcmp.gt.f32.partialorder %v318, 20.0
    %vm525 = vcmp.gt.f32.partialorder %v323, 20.0
    %vm526 = vcmp.gt.f32.partialorder %v328, 20.0
    %vm527 = vcmp.gt.f32.partialorder %v333, 20.0
    %vm528 = vcmp.gt.f32.partialorder %v338, 20.0
    %vm529 = vcmp.gt.f32.partialorder %v343, 20.0
    %vm530 = vcmp.gt.f32.partialorder %v348, 20.0
    %vm531 = vcmp.gt.f32.partialorder %v353, 20.0
    %vm532 = vcmp.gt.f32.partialorder %v358, 20.0
    %vm533 = vcmp.gt.f32.partialorder %v363, 20.0
    %vm534 = vcmp.gt.f32.partialorder %v368, 20.0
    %vm535 = vcmp.gt.f32.partialorder %v373, 20.0
    %v536 = vsel %vm520, %v298, %v504
    %v537 = vsel %vm521, %v303, %v505
    %v538 = vsel %vm522, %v308, %v506
    %v539 = vsel %vm523, %v313, %v507
    %v540 = vsel %vm524, %v318, %v508
    %v541 = vsel %vm525, %v323, %v509
    %v542 = vsel %vm526, %v328, %v510
    %v543 = vsel %vm527, %v333, %v511
    %v544 = vsel %vm528, %v338, %v512
    %v545 = vsel %vm529, %v343, %v513
    %v546 = vsel %vm530, %v348, %v514
    %v547 = vsel %vm531, %v353, %v515
    %v548 = vsel %vm532, %v358, %v516
    %v549 = vsel %vm533, %v363, %v517
    %v550 = vsel %vm534, %v368, %v518
    %v551 = vsel %vm535, %v373, %v519
    %s552 = scalar_lea.vmem [#allocation2], 128
    %v553 = vld [vmem:[%s552] sm:$0xff]
    %v554 = vld [vmem:[%s552 + $0x8] sm:$0xff]
    %v555 = vld [vmem:[%s552 + $0x10] sm:$0xff]
    %v556 = vld [vmem:[%s552 + $0x18] sm:$0xff]
    %v557 = vld [vmem:[%s552 + $0x20] sm:$0xff]
    %v558 = vld [vmem:[%s552 + $0x28] sm:$0xff]
    %v559 = vld [vmem:[%s552 + $0x30] sm:$0xff]
    %v560 = vld [vmem:[%s552 + $0x38] sm:$0xff]
    %v561 = vld [vmem:[%s552 + $0x40] sm:$0xff]
    %v562 = vld [vmem:[%s552 + $0x48] sm:$0xff]
    %v563 = vld [vmem:[%s552 + $0x50] sm:$0xff]
    %v564 = vld [vmem:[%s552 + $0x58] sm:$0xff]
    %v565 = vld [vmem:[%s552 + $0x60] sm:$0xff]
    %v566 = vld [vmem:[%s552 + $0x68] sm:$0xff]
    %v567 = vld [vmem:[%s552 + $0x70] sm:$0xff]
    %v568 = vld [vmem:[%s552 + $0x78] sm:$0xff]
    %569 = vmatprep.subr.mxu0 0.0
    %570 = vmatpush1.msra.mxu0 %v553
    %571 = vmatprep.subr.mxu0 0.0
    %572 = vmatpush1.msra.mxu0 %v554
    %573 = vmatprep.subr.mxu0 0.0
    %574 = vmatpush1.msra.mxu0 %v555
    %575 = vmatprep.subr.mxu0 0.0
    %576 = vmatpush1.msra.mxu0 %v556
    %577 = vmatprep.subr.mxu0 0.0
    %578 = vmatpush1.msra.mxu0 %v557
    %579 = vmatprep.subr.mxu0 0.0
    %580 = vmatpush1.msra.mxu0 %v558
    %581 = vmatprep.subr.mxu0 0.0
    %582 = vmatpush1.msra.mxu0 %v559
    %583 = vmatprep.subr.mxu0 0.0
    %584 = vmatpush1.msra.mxu0 %v560
    %585 = vmatprep.subr.mxu0 0.0
    %586 = vmatpush1.msra.mxu0 %v561
    %587 = vmatprep.subr.mxu0 0.0
    %588 = vmatpush1.msra.mxu0 %v562
    %589 = vmatprep.subr.mxu0 0.0
    %590 = vmatpush1.msra.mxu0 %v563
    %591 = vmatprep.subr.mxu0 0.0
    %592 = vmatpush1.msra.mxu0 %v564
    %593 = vmatprep.subr.mxu0 0.0
    %594 = vmatpush1.msra.mxu0 %v565
    %595 = vmatprep.subr.mxu0 0.0
    %596 = vmatpush1.msra.mxu0 %v566
    %597 = vmatprep.subr.mxu0 0.0
    %598 = vmatpush1.msra.mxu0 %v567
    %599 = vmatprep.subr.mxu0 0.0
    %600 = vmatpush1.msra.mxu0 %v568
    %601 = vmatprep.subr.mxu0 0.0
    %602 = vmatpush1.msra.mxu0 0.0
    %603 = vmatprep.subr.mxu0 0.0
    %604 = vmatpush1.msra.mxu0 0.0
    %605 = vmatprep.subr.mxu0 0.0
    %606 = vmatpush1.msra.mxu0 0.0
    %607 = vmatprep.subr.mxu0 0.0
    %608 = vmatpush1.msra.mxu0 0.0
    %609 = vmatprep.subr.mxu0 0.0
    %610 = vmatpush1.msra.mxu0 0.0
    %611 = vmatprep.subr.mxu0 0.0
    %612 = vmatpush1.msra.mxu0 0.0
    %613 = vmatprep.subr.mxu0 0.0
    %614 = vmatpush1.msra.mxu0 0.0
    %615 = vmatprep.subr.mxu0 0.0
    %616 = vmatpush1.msra.mxu0 0.0
    %617 = vmatprep.subr.mxu0 0.0
    %618 = vmatpush1.msra.mxu0 0.0
    %619 = vmatprep.subr.mxu0 0.0
    %620 = vmatpush1.msra.mxu0 0.0
    %621 = vmatprep.subr.mxu0 0.0
    %622 = vmatpush1.msra.mxu0 0.0
    %623 = vmatprep.subr.mxu0 0.0
    %624 = vmatpush1.msra.mxu0 0.0
    %625 = vmatprep.subr.mxu0 0.0
    %626 = vmatpush1.msra.mxu0 0.0
    %627 = vmatprep.subr.mxu0 0.0
    %628 = vmatpush1.msra.mxu0 0.0
    %629 = vmatprep.subr.mxu0 0.0
    %630 = vmatpush1.msra.mxu0 0.0
    %631 = vmatprep.subr.mxu0 0.0
    %632 = vmatpush1.msra.mxu0 0.0
    %633 = vmatprep.mubr.f32.mxu0 0.0
    %634 = vmatmul.mubr.f32.gmra.mrb[0].mxu0 %v536
    %v635 = vpop.f32.mrb[0].mxu0
    %v636 = vadd.f32 0.0, %v635
    %v637 = vpop.f32.mrb[0].mxu0
    %638 = vmatprep.mubr.f32.mxu0 0.0
    %639 = vmatmul.mubr.f32.gmra.mrb[0].mxu0 %v537
    %v640 = vpop.f32.mrb[0].mxu0
    %v641 = vadd.f32 0.0, %v640
    %v642 = vpop.f32.mrb[0].mxu0
    %643 = vmatprep.mubr.f32.mxu0 0.0
    %644 = vmatmul.mubr.f32.gmra.mrb[0].mxu0 %v538
    %v645 = vpop.f32.mrb[0].mxu0
    %v646 = vadd.f32 0.0, %v645
    %v647 = vpop.f32.mrb[0].mxu0
    %648 = vmatprep.mubr.f32.mxu0 0.0
    %649 = vmatmul.mubr.f32.gmra.mrb[0].mxu0 %v539
    %v650 = vpop.f32.mrb[0].mxu0
    %v651 = vadd.f32 0.0, %v650
    %v652 = vpop.f32.mrb[0].mxu0
    %653 = vmatprep.mubr.f32.mxu0 0.0
    %654 = vmatmul.mubr.f32.gmra.mrb[0].mxu0 %v540
    %v655 = vpop.f32.mrb[0].mxu0
    %v656 = vadd.f32 0.0, %v655
    %v657 = vpop.f32.mrb[0].mxu0
    %658 = vmatprep.mubr.f32.mxu0 0.0
    %659 = vmatmul.mubr.f32.gmra.mrb[0].mxu0 %v541
    %v660 = vpop.f32.mrb[0].mxu0
    %v661 = vadd.f32 0.0, %v660
    %v662 = vpop.f32.mrb[0].mxu0
    %663 = vmatprep.mubr.f32.mxu0 0.0
    %664 = vmatmul.mubr.f32.gmra.mrb[0].mxu0 %v542
    %v665 = vpop.f32.mrb[0].mxu0
    %v666 = vadd.f32 0.0, %v665
    %v667 = vpop.f32.mrb[0].mxu0
    %668 = vmatprep.mubr.f32.mxu0 0.0
    %669 = vmatmul.mubr.f32.gmra.mrb[0].mxu0 %v543
    %v670 = vpop.f32.mrb[0].mxu0
    %v671 = vadd.f32 0.0, %v670
    %v672 = vpop.f32.mrb[0].mxu0
    %673 = vmatprep.mubr.f32.mxu0 0.0
    %674 = vmatmul.mubr.f32.gmra.mrb[0].mxu0 %v544
    %v675 = vpop.f32.mrb[0].mxu0
    %v676 = vadd.f32 0.0, %v675
    %v677 = vpop.f32.mrb[0].mxu0
    %678 = vmatprep.mubr.f32.mxu0 0.0
    %679 = vmatmul.mubr.f32.gmra.mrb[0].mxu0 %v545
    %v680 = vpop.f32.mrb[0].mxu0
    %v681 = vadd.f32 0.0, %v680
    %v682 = vpop.f32.mrb[0].mxu0
    %683 = vmatprep.mubr.f32.mxu0 0.0
    %684 = vmatmul.mubr.f32.gmra.mrb[0].mxu0 %v546
    %v685 = vpop.f32.mrb[0].mxu0
    %v686 = vadd.f32 0.0, %v685
    %v687 = vpop.f32.mrb[0].mxu0
    %688 = vmatprep.mubr.f32.mxu0 0.0
    %689 = vmatmul.mubr.f32.gmra.mrb[0].mxu0 %v547
    %v690 = vpop.f32.mrb[0].mxu0
    %v691 = vadd.f32 0.0, %v690
    %v692 = vpop.f32.mrb[0].mxu0
    %693 = vmatprep.mubr.f32.mxu0 0.0
    %694 = vmatmul.mubr.f32.gmra.mrb[0].mxu0 %v548
    %v695 = vpop.f32.mrb[0].mxu0
    %v696 = vadd.f32 0.0, %v695
    %v697 = vpop.f32.mrb[0].mxu0
    %698 = vmatprep.mubr.f32.mxu0 0.0
    %699 = vmatmul.mubr.f32.gmra.mrb[0].mxu0 %v549
    %v700 = vpop.f32.mrb[0].mxu0
    %v701 = vadd.f32 0.0, %v700
    %v702 = vpop.f32.mrb[0].mxu0
    %703 = vmatprep.mubr.f32.mxu0 0.0
    %704 = vmatmul.mubr.f32.gmra.mrb[0].mxu0 %v550
    %v705 = vpop.f32.mrb[0].mxu0
    %v706 = vadd.f32 0.0, %v705
    %v707 = vpop.f32.mrb[0].mxu0
    %708 = vmatprep.mubr.f32.mxu0 0.0
    %709 = vmatmul.mubr.f32.gmra.mrb[0].mxu0 %v551
    %v710 = vpop.f32.mrb[0].mxu0
    %v711 = vadd.f32 0.0, %v710
    %v712 = vpop.f32.mrb[0].mxu0
    %713 = vdwg.mxu0
    %s714 = scalar_lea.vmem %s3, 1
    %v715 = vld [vmem:[%s714] sm:$0x1]
    %v717 = vlaneseq
    %v718 = vshrl.u32 %v717, 7
    %v719 = vsub.s32 0, %v718
    %v720 = vrot.slane %v715, %v719
    %722 = vmatprep.subr.mxu0 0.0
    %723 = vmatpush1.msra.mxu0 %v636
    %724 = vmatprep.subr.mxu0 0.0
    %725 = vmatpush1.msra.mxu0 %v641
    %726 = vmatprep.subr.mxu0 0.0
    %727 = vmatpush1.msra.mxu0 %v646
    %728 = vmatprep.subr.mxu0 0.0
    %729 = vmatpush1.msra.mxu0 %v651
    %730 = vmatprep.subr.mxu0 0.0
    %731 = vmatpush1.msra.mxu0 %v656
    %732 = vmatprep.subr.mxu0 0.0
    %733 = vmatpush1.msra.mxu0 %v661
    %734 = vmatprep.subr.mxu0 0.0
    %735 = vmatpush1.msra.mxu0 %v666
    %736 = vmatprep.subr.mxu0 0.0
    %737 = vmatpush1.msra.mxu0 %v671
    %738 = vmatprep.subr.mxu0 0.0
    %739 = vmatpush1.msra.mxu0 %v676
    %740 = vmatprep.subr.mxu0 0.0
    %741 = vmatpush1.msra.mxu0 %v681
    %742 = vmatprep.subr.mxu0 0.0
    %743 = vmatpush1.msra.mxu0 %v686
    %744 = vmatprep.subr.mxu0 0.0
    %745 = vmatpush1.msra.mxu0 %v691
    %746 = vmatprep.subr.mxu0 0.0
    %747 = vmatpush1.msra.mxu0 %v696
    %748 = vmatprep.subr.mxu0 0.0
    %749 = vmatpush1.msra.mxu0 %v701
    %750 = vmatprep.subr.mxu0 0.0
    %751 = vmatpush1.msra.mxu0 %v706
    %752 = vmatprep.subr.mxu0 0.0
    %753 = vmatpush1.msra.mxu0 %v711
    %754 = vmatprep.subr.mxu0 0.0
    %755 = vmatpush1.msra.mxu0 0.0
    %756 = vmatprep.subr.mxu0 0.0
    %757 = vmatpush1.msra.mxu0 0.0
    %758 = vmatprep.subr.mxu0 0.0
    %759 = vmatpush1.msra.mxu0 0.0
    %760 = vmatprep.subr.mxu0 0.0
    %761 = vmatpush1.msra.mxu0 0.0
    %762 = vmatprep.subr.mxu0 0.0
    %763 = vmatpush1.msra.mxu0 0.0
    %764 = vmatprep.subr.mxu0 0.0
    %765 = vmatpush1.msra.mxu0 0.0
    %766 = vmatprep.subr.mxu0 0.0
    %767 = vmatpush1.msra.mxu0 0.0
    %768 = vmatprep.subr.mxu0 0.0
    %769 = vmatpush1.msra.mxu0 0.0
    %770 = vmatprep.subr.mxu0 0.0
    %771 = vmatpush1.msra.mxu0 0.0
    %772 = vmatprep.subr.mxu0 0.0
    %773 = vmatpush1.msra.mxu0 0.0
    %774 = vmatprep.subr.mxu0 0.0
    %775 = vmatpush1.msra.mxu0 0.0
    %776 = vmatprep.subr.mxu0 0.0
    %777 = vmatpush1.msra.mxu0 0.0
    %778 = vmatprep.subr.mxu0 0.0
    %779 = vmatpush1.msra.mxu0 0.0
    %780 = vmatprep.subr.mxu0 0.0
    %781 = vmatpush1.msra.mxu0 0.0
    %782 = vmatprep.subr.mxu0 0.0
    %783 = vmatpush1.msra.mxu0 0.0
    %784 = vmatprep.subr.mxu0 0.0
    %785 = vmatpush1.msra.mxu0 0.0
    %786 = vmatprep.mubr.f32.mxu0 0.0
    %787 = vmatmul.mubr.f32.gmra.mrb[0].mxu0 %v31
    %v788 = vpop.f32.mrb[0].mxu0
    %v789 = vadd.f32 %v720, %v788
    %v790 = vpop.f32.mrb[0].mxu0
    %791 = vmatprep.mubr.f32.mxu0 0.0
    %792 = vmatmul.mubr.f32.gmra.mrb[0].mxu0 %v32
    %v793 = vpop.f32.mrb[0].mxu0
    %v794 = vadd.f32 %v720, %v793
    %v795 = vpop.f32.mrb[0].mxu0
    %796 = vmatprep.mubr.f32.mxu0 0.0
    %797 = vmatmul.mubr.f32.gmra.mrb[0].mxu0 %v33
    %v798 = vpop.f32.mrb[0].mxu0
    %v799 = vadd.f32 %v720, %v798
    %v800 = vpop.f32.mrb[0].mxu0
    %801 = vmatprep.mubr.f32.mxu0 0.0
    %802 = vmatmul.mubr.f32.gmra.mrb[0].mxu0 %v34
    %v803 = vpop.f32.mrb[0].mxu0
    %v804 = vadd.f32 %v720, %v803
    %v805 = vpop.f32.mrb[0].mxu0
    %806 = vmatprep.mubr.f32.mxu0 0.0
    %807 = vmatmul.mubr.f32.gmra.mrb[0].mxu0 %v35
    %v808 = vpop.f32.mrb[0].mxu0
    %v809 = vadd.f32 %v720, %v808
    %v810 = vpop.f32.mrb[0].mxu0
    %811 = vmatprep.mubr.f32.mxu0 0.0
    %812 = vmatmul.mubr.f32.gmra.mrb[0].mxu0 %v36
    %v813 = vpop.f32.mrb[0].mxu0
    %v814 = vadd.f32 %v720, %v813
    %v815 = vpop.f32.mrb[0].mxu0
    %816 = vmatprep.mubr.f32.mxu0 0.0
    %817 = vmatmul.mubr.f32.gmra.mrb[0].mxu0 %v37
    %v818 = vpop.f32.mrb[0].mxu0
    %v819 = vadd.f32 %v720, %v818
    %v820 = vpop.f32.mrb[0].mxu0
    %821 = vmatprep.mubr.f32.mxu0 0.0
    %822 = vmatmul.mubr.f32.gmra.mrb[0].mxu0 %v38
    %v823 = vpop.f32.mrb[0].mxu0
    %v824 = vadd.f32 %v720, %v823
    %v825 = vpop.f32.mrb[0].mxu0
    %826 = vmatprep.mubr.f32.mxu0 0.0
    %827 = vmatmul.mubr.f32.gmra.mrb[0].mxu0 %v39
    %v828 = vpop.f32.mrb[0].mxu0
    %v829 = vadd.f32 %v720, %v828
    %v830 = vpop.f32.mrb[0].mxu0
    %831 = vmatprep.mubr.f32.mxu0 0.0
    %832 = vmatmul.mubr.f32.gmra.mrb[0].mxu0 %v40
    %v833 = vpop.f32.mrb[0].mxu0
    %v834 = vadd.f32 %v720, %v833
    %v835 = vpop.f32.mrb[0].mxu0
    %836 = vmatprep.mubr.f32.mxu0 0.0
    %837 = vmatmul.mubr.f32.gmra.mrb[0].mxu0 %v41
    %v838 = vpop.f32.mrb[0].mxu0
    %v839 = vadd.f32 %v720, %v838
    %v840 = vpop.f32.mrb[0].mxu0
    %841 = vmatprep.mubr.f32.mxu0 0.0
    %842 = vmatmul.mubr.f32.gmra.mrb[0].mxu0 %v42
    %v843 = vpop.f32.mrb[0].mxu0
    %v844 = vadd.f32 %v720, %v843
    %v845 = vpop.f32.mrb[0].mxu0
    %846 = vmatprep.mubr.f32.mxu0 0.0
    %847 = vmatmul.mubr.f32.gmra.mrb[0].mxu0 %v43
    %v848 = vpop.f32.mrb[0].mxu0
    %v849 = vadd.f32 %v720, %v848
    %v850 = vpop.f32.mrb[0].mxu0
    %851 = vmatprep.mubr.f32.mxu0 0.0
    %852 = vmatmul.mubr.f32.gmra.mrb[0].mxu0 %v44
    %v853 = vpop.f32.mrb[0].mxu0
    %v854 = vadd.f32 %v720, %v853
    %v855 = vpop.f32.mrb[0].mxu0
    %856 = vmatprep.mubr.f32.mxu0 0.0
    %857 = vmatmul.mubr.f32.gmra.mrb[0].mxu0 %v45
    %v858 = vpop.f32.mrb[0].mxu0
    %v859 = vadd.f32 %v720, %v858
    %v860 = vpop.f32.mrb[0].mxu0
    %861 = vmatprep.mubr.f32.mxu0 0.0
    %862 = vmatmul.mubr.f32.gmra.mrb[0].mxu0 %v46
    %v863 = vpop.f32.mrb[0].mxu0
    %v864 = vadd.f32 %v720, %v863
    %v865 = vpop.f32.mrb[0].mxu0
    %866 = vdwg.mxu0
    %v867 = vmin.f32 %v789, 20.0
    %v868 = vmin.f32 %v794, 20.0
    %v869 = vmin.f32 %v799, 20.0
    %v870 = vmin.f32 %v804, 20.0
    %v871 = vmin.f32 %v809, 20.0
    %v872 = vmin.f32 %v814, 20.0
    %v873 = vmin.f32 %v819, 20.0
    %v874 = vmin.f32 %v824, 20.0
    %v875 = vmin.f32 %v829, 20.0
    %v876 = vmin.f32 %v834, 20.0
    %v877 = vmin.f32 %v839, 20.0
    %v878 = vmin.f32 %v844, 20.0
    %v879 = vmin.f32 %v849, 20.0
    %v880 = vmin.f32 %v854, 20.0
    %v881 = vmin.f32 %v859, 20.0
    %v882 = vmin.f32 %v864, 20.0
    %v883 = vmul.f32 %v867, 1.442695
    %v884 = vpow.pop %v883
    %v885 = vmul.f32 %v868, 1.442695
    %v886 = vpow.pop %v885
    %v887 = vmul.f32 %v869, 1.442695
    %v888 = vpow.pop %v887
    %v889 = vmul.f32 %v870, 1.442695
    %v890 = vpow.pop %v889
    %v891 = vmul.f32 %v871, 1.442695
    %v892 = vpow.pop %v891
    %v893 = vmul.f32 %v872, 1.442695
    %v894 = vpow.pop %v893
    %v895 = vmul.f32 %v873, 1.442695
    %v896 = vpow.pop %v895
    %v897 = vmul.f32 %v874, 1.442695
    %v898 = vpow.pop %v897
    %v899 = vmul.f32 %v875, 1.442695
    %v900 = vpow.pop %v899
    %v901 = vmul.f32 %v876, 1.442695
    %v902 = vpow.pop %v901
    %v903 = vmul.f32 %v877, 1.442695
    %v904 = vpow.pop %v903
    %v905 = vmul.f32 %v878, 1.442695
    %v906 = vpow.pop %v905
    %v907 = vmul.f32 %v879, 1.442695
    %v908 = vpow.pop %v907
    %v909 = vmul.f32 %v880, 1.442695
    %v910 = vpow.pop %v909
    %v911 = vmul.f32 %v881, 1.442695
    %v912 = vpow.pop %v911
    %v913 = vmul.f32 %v882, 1.442695
    %v914 = vpow.pop %v913
    %v915 = vadd.f32 %v884, 2.0
    %v916 = vadd.f32 %v886, 2.0
    %v917 = vadd.f32 %v888, 2.0
    %v918 = vadd.f32 %v890, 2.0
    %v919 = vadd.f32 %v892, 2.0
    %v920 = vadd.f32 %v894, 2.0
    %v921 = vadd.f32 %v896, 2.0
    %v922 = vadd.f32 %v898, 2.0
    %v923 = vadd.f32 %v900, 2.0
    %v924 = vadd.f32 %v902, 2.0
    %v925 = vadd.f32 %v904, 2.0
    %v926 = vadd.f32 %v906, 2.0
    %v927 = vadd.f32 %v908, 2.0
    %v928 = vadd.f32 %v910, 2.0
    %v929 = vadd.f32 %v912, 2.0
    %v930 = vadd.f32 %v914, 2.0
    %v931 = vmul.f32 %v884, %v915
    %v932 = vmul.f32 %v886, %v916
    %v933 = vmul.f32 %v888, %v917
    %v934 = vmul.f32 %v890, %v918
    %v935 = vmul.f32 %v892, %v919
    %v936 = vmul.f32 %v894, %v920
    %v937 = vmul.f32 %v896, %v921
    %v938 = vmul.f32 %v898, %v922
    %v939 = vmul.f32 %v900, %v923
    %v940 = vmul.f32 %v902, %v924
    %v941 = vmul.f32 %v904, %v925
    %v942 = vmul.f32 %v906, %v926
    %v943 = vmul.f32 %v908, %v927
    %v944 = vmul.f32 %v910, %v928
    %v945 = vmul.f32 %v912, %v929
    %v946 = vmul.f32 %v914, %v930
    %v947 = vadd.f32 %v931, 2.0
    %v948 = vadd.f32 %v932, 2.0
    %v949 = vadd.f32 %v933, 2.0
    %v950 = vadd.f32 %v934, 2.0
    %v951 = vadd.f32 %v935, 2.0
    %v952 = vadd.f32 %v936, 2.0
    %v953 = vadd.f32 %v937, 2.0
    %v954 = vadd.f32 %v938, 2.0
    %v955 = vadd.f32 %v939, 2.0
    %v956 = vadd.f32 %v940, 2.0
    %v957 = vadd.f32 %v941, 2.0
    %v958 = vadd.f32 %v942, 2.0
    %v959 = vadd.f32 %v943, 2.0
    %v960 = vadd.f32 %v944, 2.0
    %v961 = vadd.f32 %v945, 2.0
    %v962 = vadd.f32 %v946, 2.0
    %v963 = vrcp.pop %v947
    %v964 = vmul.f32 %v931, %v963
    %v965 = vrcp.pop %v948
    %v966 = vmul.f32 %v932, %v965
    %v967 = vrcp.pop %v949
    %v968 = vmul.f32 %v933, %v967
    %v969 = vrcp.pop %v950
    %v970 = vmul.f32 %v934, %v969
    %v971 = vrcp.pop %v951
    %v972 = vmul.f32 %v935, %v971
    %v973 = vrcp.pop %v952
    %v974 = vmul.f32 %v936, %v973
    %v975 = vrcp.pop %v953
    %v976 = vmul.f32 %v937, %v975
    %v977 = vrcp.pop %v954
    %v978 = vmul.f32 %v938, %v977
    %v979 = vrcp.pop %v955
    %v980 = vmul.f32 %v939, %v979
    %v981 = vrcp.pop %v956
    %v982 = vmul.f32 %v940, %v981
    %v983 = vrcp.pop %v957
    %v984 = vmul.f32 %v941, %v983
    %v985 = vrcp.pop %v958
    %v986 = vmul.f32 %v942, %v985
    %v987 = vrcp.pop %v959
    %v988 = vmul.f32 %v943, %v987
    %v989 = vrcp.pop %v960
    %v990 = vmul.f32 %v944, %v989
    %v991 = vrcp.pop %v961
    %v992 = vmul.f32 %v945, %v991
    %v993 = vrcp.pop %v962
    %v994 = vmul.f32 %v946, %v993
    %v995 = vmul.f32 %v789, %v964
    %v996 = vmul.f32 %v794, %v966
    %v997 = vmul.f32 %v799, %v968
    %v998 = vmul.f32 %v804, %v970
    %v999 = vmul.f32 %v809, %v972
    %v1000 = vmul.f32 %v814, %v974
    %v1001 = vmul.f32 %v819, %v976
    %v1002 = vmul.f32 %v824, %v978
    %v1003 = vmul.f32 %v829, %v980
    %v1004 = vmul.f32 %v834, %v982
    %v1005 = vmul.f32 %v839, %v984
    %v1006 = vmul.f32 %v844, %v986
    %v1007 = vmul.f32 %v849, %v988
    %v1008 = vmul.f32 %v854, %v990
    %v1009 = vmul.f32 %v859, %v992
    %v1010 = vmul.f32 %v864, %v994
    %vm1011 = vcmp.gt.f32.partialorder %v789, 20.0
    %vm1012 = vcmp.gt.f32.partialorder %v794, 20.0
    %vm1013 = vcmp.gt.f32.partialorder %v799, 20.0
    %vm1014 = vcmp.gt.f32.partialorder %v804, 20.0
    %vm1015 = vcmp.gt.f32.partialorder %v809, 20.0
    %vm1016 = vcmp.gt.f32.partialorder %v814, 20.0
    %vm1017 = vcmp.gt.f32.partialorder %v819, 20.0
    %vm1018 = vcmp.gt.f32.partialorder %v824, 20.0
    %vm1019 = vcmp.gt.f32.partialorder %v829, 20.0
    %vm1020 = vcmp.gt.f32.partialorder %v834, 20.0
    %vm1021 = vcmp.gt.f32.partialorder %v839, 20.0
    %vm1022 = vcmp.gt.f32.partialorder %v844, 20.0
    %vm1023 = vcmp.gt.f32.partialorder %v849, 20.0
    %vm1024 = vcmp.gt.f32.partialorder %v854, 20.0
    %vm1025 = vcmp.gt.f32.partialorder %v859, 20.0
    %vm1026 = vcmp.gt.f32.partialorder %v864, 20.0
    %v1027 = vsel %vm1011, %v789, %v995
    %v1028 = vsel %vm1012, %v794, %v996
    %v1029 = vsel %vm1013, %v799, %v997
    %v1030 = vsel %vm1014, %v804, %v998
    %v1031 = vsel %vm1015, %v809, %v999
    %v1032 = vsel %vm1016, %v814, %v1000
    %v1033 = vsel %vm1017, %v819, %v1001
    %v1034 = vsel %vm1018, %v824, %v1002
    %v1035 = vsel %vm1019, %v829, %v1003
    %v1036 = vsel %vm1020, %v834, %v1004
    %v1037 = vsel %vm1021, %v839, %v1005
    %v1038 = vsel %vm1022, %v844, %v1006
    %v1039 = vsel %vm1023, %v849, %v1007
    %v1040 = vsel %vm1024, %v854, %v1008
    %v1041 = vsel %vm1025, %v859, %v1009
    %v1042 = vsel %vm1026, %v864, %v1010
    %s1043 = scalar_lea.vmem [#allocation2], 256
    %v1044 = vld [vmem:[%s1043] sm:$0xff]
    %v1045 = vld [vmem:[%s1043 + $0x8] sm:$0xff]
    %v1046 = vld [vmem:[%s1043 + $0x10] sm:$0xff]
    %v1047 = vld [vmem:[%s1043 + $0x18] sm:$0xff]
    %v1048 = vld [vmem:[%s1043 + $0x20] sm:$0xff]
    %v1049 = vld [vmem:[%s1043 + $0x28] sm:$0xff]
    %v1050 = vld [vmem:[%s1043 + $0x30] sm:$0xff]
    %v1051 = vld [vmem:[%s1043 + $0x38] sm:$0xff]
    %v1052 = vld [vmem:[%s1043 + $0x40] sm:$0xff]
    %v1053 = vld [vmem:[%s1043 + $0x48] sm:$0xff]
    %v1054 = vld [vmem:[%s1043 + $0x50] sm:$0xff]
    %v1055 = vld [vmem:[%s1043 + $0x58] sm:$0xff]
    %v1056 = vld [vmem:[%s1043 + $0x60] sm:$0xff]
    %v1057 = vld [vmem:[%s1043 + $0x68] sm:$0xff]
    %v1058 = vld [vmem:[%s1043 + $0x70] sm:$0xff]
    %v1059 = vld [vmem:[%s1043 + $0x78] sm:$0xff]
    %1060 = vmatprep.subr.mxu0 0.0
    %1061 = vmatpush1.msra.mxu0 %v1044
    %1062 = vmatprep.subr.mxu0 0.0
    %1063 = vmatpush1.msra.mxu0 %v1045
    %1064 = vmatprep.subr.mxu0 0.0
    %1065 = vmatpush1.msra.mxu0 %v1046
    %1066 = vmatprep.subr.mxu0 0.0
    %1067 = vmatpush1.msra.mxu0 %v1047
    %1068 = vmatprep.subr.mxu0 0.0
    %1069 = vmatpush1.msra.mxu0 %v1048
    %1070 = vmatprep.subr.mxu0 0.0
    %1071 = vmatpush1.msra.mxu0 %v1049
    %1072 = vmatprep.subr.mxu0 0.0
    %1073 = vmatpush1.msra.mxu0 %v1050
    %1074 = vmatprep.subr.mxu0 0.0
    %1075 = vmatpush1.msra.mxu0 %v1051
    %1076 = vmatprep.subr.mxu0 0.0
    %1077 = vmatpush1.msra.mxu0 %v1052
    %1078 = vmatprep.subr.mxu0 0.0
    %1079 = vmatpush1.msra.mxu0 %v1053
    %1080 = vmatprep.subr.mxu0 0.0
    %1081 = vmatpush1.msra.mxu0 %v1054
    %1082 = vmatprep.subr.mxu0 0.0
    %1083 = vmatpush1.msra.mxu0 %v1055
    %1084 = vmatprep.subr.mxu0 0.0
    %1085 = vmatpush1.msra.mxu0 %v1056
    %1086 = vmatprep.subr.mxu0 0.0
    %1087 = vmatpush1.msra.mxu0 %v1057
    %1088 = vmatprep.subr.mxu0 0.0
    %1089 = vmatpush1.msra.mxu0 %v1058
    %1090 = vmatprep.subr.mxu0 0.0
    %1091 = vmatpush1.msra.mxu0 %v1059
    %1092 = vmatprep.subr.mxu0 0.0
    %1093 = vmatpush1.msra.mxu0 0.0
    %1094 = vmatprep.subr.mxu0 0.0
    %1095 = vmatpush1.msra.mxu0 0.0
    %1096 = vmatprep.subr.mxu0 0.0
    %1097 = vmatpush1.msra.mxu0 0.0
    %1098 = vmatprep.subr.mxu0 0.0
    %1099 = vmatpush1.msra.mxu0 0.0
    %1100 = vmatprep.subr.mxu0 0.0
    %1101 = vmatpush1.msra.mxu0 0.0
    %1102 = vmatprep.subr.mxu0 0.0
    %1103 = vmatpush1.msra.mxu0 0.0
    %1104 = vmatprep.subr.mxu0 0.0
    %1105 = vmatpush1.msra.mxu0 0.0
    %1106 = vmatprep.subr.mxu0 0.0
    %1107 = vmatpush1.msra.mxu0 0.0
    %1108 = vmatprep.subr.mxu0 0.0
    %1109 = vmatpush1.msra.mxu0 0.0
    %1110 = vmatprep.subr.mxu0 0.0
    %1111 = vmatpush1.msra.mxu0 0.0
    %1112 = vmatprep.subr.mxu0 0.0
    %1113 = vmatpush1.msra.mxu0 0.0
    %1114 = vmatprep.subr.mxu0 0.0
    %1115 = vmatpush1.msra.mxu0 0.0
    %1116 = vmatprep.subr.mxu0 0.0
    %1117 = vmatpush1.msra.mxu0 0.0
    %1118 = vmatprep.subr.mxu0 0.0
    %1119 = vmatpush1.msra.mxu0 0.0
    %1120 = vmatprep.subr.mxu0 0.0
    %1121 = vmatpush1.msra.mxu0 0.0
    %1122 = vmatprep.subr.mxu0 0.0
    %1123 = vmatpush1.msra.mxu0 0.0
    %1124 = vmatprep.mubr.f32.mxu0 0.0
    %1125 = vmatmul.mubr.f32.gmra.mrb[0].mxu0 %v1027
    %v1126 = vpop.f32.mrb[0].mxu0
    %v1127 = vadd.f32 0.0, %v1126
    %v1128 = vpop.f32.mrb[0].mxu0
    %1129 = vmatprep.mubr.f32.mxu0 0.0
    %1130 = vmatmul.mubr.f32.gmra.mrb[0].mxu0 %v1028
    %v1131 = vpop.f32.mrb[0].mxu0
    %v1132 = vadd.f32 0.0, %v1131
    %v1133 = vpop.f32.mrb[0].mxu0
    %1134 = vmatprep.mubr.f32.mxu0 0.0
    %1135 = vmatmul.mubr.f32.gmra.mrb[0].mxu0 %v1029
    %v1136 = vpop.f32.mrb[0].mxu0
    %v1137 = vadd.f32 0.0, %v1136
    %v1138 = vpop.f32.mrb[0].mxu0
    %1139 = vmatprep.mubr.f32.mxu0 0.0
    %1140 = vmatmul.mubr.f32.gmra.mrb[0].mxu0 %v1030
    %v1141 = vpop.f32.mrb[0].mxu0
    %v1142 = vadd.f32 0.0, %v1141
    %v1143 = vpop.f32.mrb[0].mxu0
    %1144 = vmatprep.mubr.f32.mxu0 0.0
    %1145 = vmatmul.mubr.f32.gmra.mrb[0].mxu0 %v1031
    %v1146 = vpop.f32.mrb[0].mxu0
    %v1147 = vadd.f32 0.0, %v1146
    %v1148 = vpop.f32.mrb[0].mxu0
    %1149 = vmatprep.mubr.f32.mxu0 0.0
    %1150 = vmatmul.mubr.f32.gmra.mrb[0].mxu0 %v1032
    %v1151 = vpop.f32.mrb[0].mxu0
    %v1152 = vadd.f32 0.0, %v1151
    %v1153 = vpop.f32.mrb[0].mxu0
    %1154 = vmatprep.mubr.f32.mxu0 0.0
    %1155 = vmatmul.mubr.f32.gmra.mrb[0].mxu0 %v1033
    %v1156 = vpop.f32.mrb[0].mxu0
    %v1157 = vadd.f32 0.0, %v1156
    %v1158 = vpop.f32.mrb[0].mxu0
    %1159 = vmatprep.mubr.f32.mxu0 0.0
    %1160 = vmatmul.mubr.f32.gmra.mrb[0].mxu0 %v1034
    %v1161 = vpop.f32.mrb[0].mxu0
    %v1162 = vadd.f32 0.0, %v1161
    %v1163 = vpop.f32.mrb[0].mxu0
    %1164 = vmatprep.mubr.f32.mxu0 0.0
    %1165 = vmatmul.mubr.f32.gmra.mrb[0].mxu0 %v1035
    %v1166 = vpop.f32.mrb[0].mxu0
    %v1167 = vadd.f32 0.0, %v1166
    %v1168 = vpop.f32.mrb[0].mxu0
    %1169 = vmatprep.mubr.f32.mxu0 0.0
    %1170 = vmatmul.mubr.f32.gmra.mrb[0].mxu0 %v1036
    %v1171 = vpop.f32.mrb[0].mxu0
    %v1172 = vadd.f32 0.0, %v1171
    %v1173 = vpop.f32.mrb[0].mxu0
    %1174 = vmatprep.mubr.f32.mxu0 0.0
    %1175 = vmatmul.mubr.f32.gmra.mrb[0].mxu0 %v1037
    %v1176 = vpop.f32.mrb[0].mxu0
    %v1177 = vadd.f32 0.0, %v1176
    %v1178 = vpop.f32.mrb[0].mxu0
    %1179 = vmatprep.mubr.f32.mxu0 0.0
    %1180 = vmatmul.mubr.f32.gmra.mrb[0].mxu0 %v1038
    %v1181 = vpop.f32.mrb[0].mxu0
    %v1182 = vadd.f32 0.0, %v1181
    %v1183 = vpop.f32.mrb[0].mxu0
    %1184 = vmatprep.mubr.f32.mxu0 0.0
    %1185 = vmatmul.mubr.f32.gmra.mrb[0].mxu0 %v1039
    %v1186 = vpop.f32.mrb[0].mxu0
    %v1187 = vadd.f32 0.0, %v1186
    %v1188 = vpop.f32.mrb[0].mxu0
    %1189 = vmatprep.mubr.f32.mxu0 0.0
    %1190 = vmatmul.mubr.f32.gmra.mrb[0].mxu0 %v1040
    %v1191 = vpop.f32.mrb[0].mxu0
    %v1192 = vadd.f32 0.0, %v1191
    %v1193 = vpop.f32.mrb[0].mxu0
    %1194 = vmatprep.mubr.f32.mxu0 0.0
    %1195 = vmatmul.mubr.f32.gmra.mrb[0].mxu0 %v1041
    %v1196 = vpop.f32.mrb[0].mxu0
    %v1197 = vadd.f32 0.0, %v1196
    %v1198 = vpop.f32.mrb[0].mxu0
    %1199 = vmatprep.mubr.f32.mxu0 0.0
    %1200 = vmatmul.mubr.f32.gmra.mrb[0].mxu0 %v1042
    %v1201 = vpop.f32.mrb[0].mxu0
    %v1202 = vadd.f32 0.0, %v1201
    %v1203 = vpop.f32.mrb[0].mxu0
    %1204 = vdwg.mxu0
    %s1205 = scalar_lea.vmem %s3, 2
    %v1206 = vld [vmem:[%s1205] sm:$0x1]
    %v1208 = vlaneseq
    %v1209 = vshrl.u32 %v1208, 7
    %v1210 = vsub.s32 0, %v1209
    %v1211 = vrot.slane %v1206, %v1210
    %1213 = vmatprep.subr.mxu0 0.0
    %1214 = vmatpush1.msra.mxu0 %v1127
    %1215 = vmatprep.subr.mxu0 0.0
    %1216 = vmatpush1.msra.mxu0 %v1132
    %1217 = vmatprep.subr.mxu0 0.0
    %1218 = vmatpush1.msra.mxu0 %v1137
    %1219 = vmatprep.subr.mxu0 0.0
    %1220 = vmatpush1.msra.mxu0 %v1142
    %1221 = vmatprep.subr.mxu0 0.0
    %1222 = vmatpush1.msra.mxu0 %v1147
    %1223 = vmatprep.subr.mxu0 0.0
    %1224 = vmatpush1.msra.mxu0 %v1152
    %1225 = vmatprep.subr.mxu0 0.0
    %1226 = vmatpush1.msra.mxu0 %v1157
    %1227 = vmatprep.subr.mxu0 0.0
    %1228 = vmatpush1.msra.mxu0 %v1162
    %1229 = vmatprep.subr.mxu0 0.0
    %1230 = vmatpush1.msra.mxu0 %v1167
    %1231 = vmatprep.subr.mxu0 0.0
    %1232 = vmatpush1.msra.mxu0 %v1172
    %1233 = vmatprep.subr.mxu0 0.0
    %1234 = vmatpush1.msra.mxu0 %v1177
    %1235 = vmatprep.subr.mxu0 0.0
    %1236 = vmatpush1.msra.mxu0 %v1182
    %1237 = vmatprep.subr.mxu0 0.0
    %1238 = vmatpush1.msra.mxu0 %v1187
    %1239 = vmatprep.subr.mxu0 0.0
    %1240 = vmatpush1.msra.mxu0 %v1192
    %1241 = vmatprep.subr.mxu0 0.0
    %1242 = vmatpush1.msra.mxu0 %v1197
    %1243 = vmatprep.subr.mxu0 0.0
    %1244 = vmatpush1.msra.mxu0 %v1202
    %1245 = vmatprep.subr.mxu0 0.0
    %1246 = vmatpush1.msra.mxu0 0.0
    %1247 = vmatprep.subr.mxu0 0.0
    %1248 = vmatpush1.msra.mxu0 0.0
    %1249 = vmatprep.subr.mxu0 0.0
    %1250 = vmatpush1.msra.mxu0 0.0
    %1251 = vmatprep.subr.mxu0 0.0
    %1252 = vmatpush1.msra.mxu0 0.0
    %1253 = vmatprep.subr.mxu0 0.0
    %1254 = vmatpush1.msra.mxu0 0.0
    %1255 = vmatprep.subr.mxu0 0.0
    %1256 = vmatpush1.msra.mxu0 0.0
    %1257 = vmatprep.subr.mxu0 0.0
    %1258 = vmatpush1.msra.mxu0 0.0
    %1259 = vmatprep.subr.mxu0 0.0
    %1260 = vmatpush1.msra.mxu0 0.0
    %1261 = vmatprep.subr.mxu0 0.0
    %1262 = vmatpush1.msra.mxu0 0.0
    %1263 = vmatprep.subr.mxu0 0.0
    %1264 = vmatpush1.msra.mxu0 0.0
    %1265 = vmatprep.subr.mxu0 0.0
    %1266 = vmatpush1.msra.mxu0 0.0
    %1267 = vmatprep.subr.mxu0 0.0
    %1268 = vmatpush1.msra.mxu0 0.0
    %1269 = vmatprep.subr.mxu0 0.0
    %1270 = vmatpush1.msra.mxu0 0.0
    %1271 = vmatprep.subr.mxu0 0.0
    %1272 = vmatpush1.msra.mxu0 0.0
    %1273 = vmatprep.subr.mxu0 0.0
    %1274 = vmatpush1.msra.mxu0 0.0
    %1275 = vmatprep.subr.mxu0 0.0
    %1276 = vmatpush1.msra.mxu0 0.0
    %1277 = vmatprep.mubr.f32.mxu0 0.0
    %1278 = vmatmul.mubr.f32.gmra.mrb[0].mxu0 %v31
    %v1279 = vpop.f32.mrb[0].mxu0
    %v1280 = vadd.f32 %v1211, %v1279
    %v1281 = vpop.f32.mrb[0].mxu0
    %1282 = vmatprep.mubr.f32.mxu0 0.0
    %1283 = vmatmul.mubr.f32.gmra.mrb[0].mxu0 %v32
    %v1284 = vpop.f32.mrb[0].mxu0
    %v1285 = vadd.f32 %v1211, %v1284
    %v1286 = vpop.f32.mrb[0].mxu0
    %1287 = vmatprep.mubr.f32.mxu0 0.0
    %1288 = vmatmul.mubr.f32.gmra.mrb[0].mxu0 %v33
    %v1289 = vpop.f32.mrb[0].mxu0
    %v1290 = vadd.f32 %v1211, %v1289
    %v1291 = vpop.f32.mrb[0].mxu0
    %1292 = vmatprep.mubr.f32.mxu0 0.0
    %1293 = vmatmul.mubr.f32.gmra.mrb[0].mxu0 %v34
    %v1294 = vpop.f32.mrb[0].mxu0
    %v1295 = vadd.f32 %v1211, %v1294
    %v1296 = vpop.f32.mrb[0].mxu0
    %1297 = vmatprep.mubr.f32.mxu0 0.0
    %1298 = vmatmul.mubr.f32.gmra.mrb[0].mxu0 %v35
    %v1299 = vpop.f32.mrb[0].mxu0
    %v1300 = vadd.f32 %v1211, %v1299
    %v1301 = vpop.f32.mrb[0].mxu0
    %1302 = vmatprep.mubr.f32.mxu0 0.0
    %1303 = vmatmul.mubr.f32.gmra.mrb[0].mxu0 %v36
    %v1304 = vpop.f32.mrb[0].mxu0
    %v1305 = vadd.f32 %v1211, %v1304
    %v1306 = vpop.f32.mrb[0].mxu0
    %1307 = vmatprep.mubr.f32.mxu0 0.0
    %1308 = vmatmul.mubr.f32.gmra.mrb[0].mxu0 %v37
    %v1309 = vpop.f32.mrb[0].mxu0
    %v1310 = vadd.f32 %v1211, %v1309
    %v1311 = vpop.f32.mrb[0].mxu0
    %1312 = vmatprep.mubr.f32.mxu0 0.0
    %1313 = vmatmul.mubr.f32.gmra.mrb[0].mxu0 %v38
    %v1314 = vpop.f32.mrb[0].mxu0
    %v1315 = vadd.f32 %v1211, %v1314
    %v1316 = vpop.f32.mrb[0].mxu0
    %1317 = vmatprep.mubr.f32.mxu0 0.0
    %1318 = vmatmul.mubr.f32.gmra.mrb[0].mxu0 %v39
    %v1319 = vpop.f32.mrb[0].mxu0
    %v1320 = vadd.f32 %v1211, %v1319
    %v1321 = vpop.f32.mrb[0].mxu0
    %1322 = vmatprep.mubr.f32.mxu0 0.0
    %1323 = vmatmul.mubr.f32.gmra.mrb[0].mxu0 %v40
    %v1324 = vpop.f32.mrb[0].mxu0
    %v1325 = vadd.f32 %v1211, %v1324
    %v1326 = vpop.f32.mrb[0].mxu0
    %1327 = vmatprep.mubr.f32.mxu0 0.0
    %1328 = vmatmul.mubr.f32.gmra.mrb[0].mxu0 %v41
    %v1329 = vpop.f32.mrb[0].mxu0
    %v1330 = vadd.f32 %v1211, %v1329
    %v1331 = vpop.f32.mrb[0].mxu0
    %1332 = vmatprep.mubr.f32.mxu0 0.0
    %1333 = vmatmul.mubr.f32.gmra.mrb[0].mxu0 %v42
    %v1334 = vpop.f32.mrb[0].mxu0
    %v1335 = vadd.f32 %v1211, %v1334
    %v1336 = vpop.f32.mrb[0].mxu0
    %1337 = vmatprep.mubr.f32.mxu0 0.0
    %1338 = vmatmul.mubr.f32.gmra.mrb[0].mxu0 %v43
    %v1339 = vpop.f32.mrb[0].mxu0
    %v1340 = vadd.f32 %v1211, %v1339
    %v1341 = vpop.f32.mrb[0].mxu0
    %1342 = vmatprep.mubr.f32.mxu0 0.0
    %1343 = vmatmul.mubr.f32.gmra.mrb[0].mxu0 %v44
    %v1344 = vpop.f32.mrb[0].mxu0
    %v1345 = vadd.f32 %v1211, %v1344
    %v1346 = vpop.f32.mrb[0].mxu0
    %1347 = vmatprep.mubr.f32.mxu0 0.0
    %1348 = vmatmul.mubr.f32.gmra.mrb[0].mxu0 %v45
    %v1349 = vpop.f32.mrb[0].mxu0
    %v1350 = vadd.f32 %v1211, %v1349
    %v1351 = vpop.f32.mrb[0].mxu0
    %1352 = vmatprep.mubr.f32.mxu0 0.0
    %1353 = vmatmul.mubr.f32.gmra.mrb[0].mxu0 %v46
    %v1354 = vpop.f32.mrb[0].mxu0
    %v1355 = vadd.f32 %v1211, %v1354
    %v1356 = vpop.f32.mrb[0].mxu0
    %1357 = vdwg.mxu0
    %v1358 = vmin.f32 %v1280, 20.0
    %v1359 = vmin.f32 %v1285, 20.0
    %v1360 = vmin.f32 %v1290, 20.0
    %v1361 = vmin.f32 %v1295, 20.0
    %v1362 = vmin.f32 %v1300, 20.0
    %v1363 = vmin.f32 %v1305, 20.0
    %v1364 = vmin.f32 %v1310, 20.0
    %v1365 = vmin.f32 %v1315, 20.0
    %v1366 = vmin.f32 %v1320, 20.0
    %v1367 = vmin.f32 %v1325, 20.0
    %v1368 = vmin.f32 %v1330, 20.0
    %v1369 = vmin.f32 %v1335, 20.0
    %v1370 = vmin.f32 %v1340, 20.0
    %v1371 = vmin.f32 %v1345, 20.0
    %v1372 = vmin.f32 %v1350, 20.0
    %v1373 = vmin.f32 %v1355, 20.0
    %v1374 = vmul.f32 %v1358, 1.442695
    %v1375 = vpow.pop %v1374
    %v1376 = vmul.f32 %v1359, 1.442695
    %v1377 = vpow.pop %v1376
    %v1378 = vmul.f32 %v1360, 1.442695
    %v1379 = vpow.pop %v1378
    %v1380 = vmul.f32 %v1361, 1.442695
    %v1381 = vpow.pop %v1380
    %v1382 = vmul.f32 %v1362, 1.442695
    %v1383 = vpow.pop %v1382
    %v1384 = vmul.f32 %v1363, 1.442695
    %v1385 = vpow.pop %v1384
    %v1386 = vmul.f32 %v1364, 1.442695
    %v1387 = vpow.pop %v1386
    %v1388 = vmul.f32 %v1365, 1.442695
    %v1389 = vpow.pop %v1388
    %v1390 = vmul.f32 %v1366, 1.442695
    %v1391 = vpow.pop %v1390
    %v1392 = vmul.f32 %v1367, 1.442695
    %v1393 = vpow.pop %v1392
    %v1394 = vmul.f32 %v1368, 1.442695
    %v1395 = vpow.pop %v1394
    %v1396 = vmul.f32 %v1369, 1.442695
    %v1397 = vpow.pop %v1396
    %v1398 = vmul.f32 %v1370, 1.442695
    %v1399 = vpow.pop %v1398
    %v1400 = vmul.f32 %v1371, 1.442695
    %v1401 = vpow.pop %v1400
    %v1402 = vmul.f32 %v1372, 1.442695
    %v1403 = vpow.pop %v1402
    %v1404 = vmul.f32 %v1373, 1.442695
    %v1405 = vpow.pop %v1404
    %v1406 = vadd.f32 %v1375, 2.0
    %v1407 = vadd.f32 %v1377, 2.0
    %v1408 = vadd.f32 %v1379, 2.0
    %v1409 = vadd.f32 %v1381, 2.0
    %v1410 = vadd.f32 %v1383, 2.0
    %v1411 = vadd.f32 %v1385, 2.0
    %v1412 = vadd.f32 %v1387, 2.0
    %v1413 = vadd.f32 %v1389, 2.0
    %v1414 = vadd.f32 %v1391, 2.0
    %v1415 = vadd.f32 %v1393, 2.0
    %v1416 = vadd.f32 %v1395, 2.0
    %v1417 = vadd.f32 %v1397, 2.0
    %v1418 = vadd.f32 %v1399, 2.0
    %v1419 = vadd.f32 %v1401, 2.0
    %v1420 = vadd.f32 %v1403, 2.0
    %v1421 = vadd.f32 %v1405, 2.0
    %v1422 = vmul.f32 %v1375, %v1406
    %v1423 = vmul.f32 %v1377, %v1407
    %v1424 = vmul.f32 %v1379, %v1408
    %v1425 = vmul.f32 %v1381, %v1409
    %v1426 = vmul.f32 %v1383, %v1410
    %v1427 = vmul.f32 %v1385, %v1411
    %v1428 = vmul.f32 %v1387, %v1412
    %v1429 = vmul.f32 %v1389, %v1413
    %v1430 = vmul.f32 %v1391, %v1414
    %v1431 = vmul.f32 %v1393, %v1415
    %v1432 = vmul.f32 %v1395, %v1416
    %v1433 = vmul.f32 %v1397, %v1417
    %v1434 = vmul.f32 %v1399, %v1418
    %v1435 = vmul.f32 %v1401, %v1419
    %v1436 = vmul.f32 %v1403, %v1420
    %v1437 = vmul.f32 %v1405, %v1421
    %v1438 = vadd.f32 %v1422, 2.0
    %v1439 = vadd.f32 %v1423, 2.0
    %v1440 = vadd.f32 %v1424, 2.0
    %v1441 = vadd.f32 %v1425, 2.0
    %v1442 = vadd.f32 %v1426, 2.0
    %v1443 = vadd.f32 %v1427, 2.0
    %v1444 = vadd.f32 %v1428, 2.0
    %v1445 = vadd.f32 %v1429, 2.0
    %v1446 = vadd.f32 %v1430, 2.0
    %v1447 = vadd.f32 %v1431, 2.0
    %v1448 = vadd.f32 %v1432, 2.0
    %v1449 = vadd.f32 %v1433, 2.0
    %v1450 = vadd.f32 %v1434, 2.0
    %v1451 = vadd.f32 %v1435, 2.0
    %v1452 = vadd.f32 %v1436, 2.0
    %v1453 = vadd.f32 %v1437, 2.0
    %v1454 = vrcp.pop %v1438
    %v1455 = vmul.f32 %v1422, %v1454
    %v1456 = vrcp.pop %v1439
    %v1457 = vmul.f32 %v1423, %v1456
    %v1458 = vrcp.pop %v1440
    %v1459 = vmul.f32 %v1424, %v1458
    %v1460 = vrcp.pop %v1441
    %v1461 = vmul.f32 %v1425, %v1460
    %v1462 = vrcp.pop %v1442
    %v1463 = vmul.f32 %v1426, %v1462
    %v1464 = vrcp.pop %v1443
    %v1465 = vmul.f32 %v1427, %v1464
    %v1466 = vrcp.pop %v1444
    %v1467 = vmul.f32 %v1428, %v1466
    %v1468 = vrcp.pop %v1445
    %v1469 = vmul.f32 %v1429, %v1468
    %v1470 = vrcp.pop %v1446
    %v1471 = vmul.f32 %v1430, %v1470
    %v1472 = vrcp.pop %v1447
    %v1473 = vmul.f32 %v1431, %v1472
    %v1474 = vrcp.pop %v1448
    %v1475 = vmul.f32 %v1432, %v1474
    %v1476 = vrcp.pop %v1449
    %v1477 = vmul.f32 %v1433, %v1476
    %v1478 = vrcp.pop %v1450
    %v1479 = vmul.f32 %v1434, %v1478
    %v1480 = vrcp.pop %v1451
    %v1481 = vmul.f32 %v1435, %v1480
    %v1482 = vrcp.pop %v1452
    %v1483 = vmul.f32 %v1436, %v1482
    %v1484 = vrcp.pop %v1453
    %v1485 = vmul.f32 %v1437, %v1484
    %v1486 = vmul.f32 %v1280, %v1455
    %v1487 = vmul.f32 %v1285, %v1457
    %v1488 = vmul.f32 %v1290, %v1459
    %v1489 = vmul.f32 %v1295, %v1461
    %v1490 = vmul.f32 %v1300, %v1463
    %v1491 = vmul.f32 %v1305, %v1465
    %v1492 = vmul.f32 %v1310, %v1467
    %v1493 = vmul.f32 %v1315, %v1469
    %v1494 = vmul.f32 %v1320, %v1471
    %v1495 = vmul.f32 %v1325, %v1473
    %v1496 = vmul.f32 %v1330, %v1475
    %v1497 = vmul.f32 %v1335, %v1477
    %v1498 = vmul.f32 %v1340, %v1479
    %v1499 = vmul.f32 %v1345, %v1481
    %v1500 = vmul.f32 %v1350, %v1483
    %v1501 = vmul.f32 %v1355, %v1485
    %vm1502 = vcmp.gt.f32.partialorder %v1280, 20.0
    %vm1503 = vcmp.gt.f32.partialorder %v1285, 20.0
    %vm1504 = vcmp.gt.f32.partialorder %v1290, 20.0
    %vm1505 = vcmp.gt.f32.partialorder %v1295, 20.0
    %vm1506 = vcmp.gt.f32.partialorder %v1300, 20.0
    %vm1507 = vcmp.gt.f32.partialorder %v1305, 20.0
    %vm1508 = vcmp.gt.f32.partialorder %v1310, 20.0
    %vm1509 = vcmp.gt.f32.partialorder %v1315, 20.0
    %vm1510 = vcmp.gt.f32.partialorder %v1320, 20.0
    %vm1511 = vcmp.gt.f32.partialorder %v1325, 20.0
    %vm1512 = vcmp.gt.f32.partialorder %v1330, 20.0
    %vm1513 = vcmp.gt.f32.partialorder %v1335, 20.0
    %vm1514 = vcmp.gt.f32.partialorder %v1340, 20.0
    %vm1515 = vcmp.gt.f32.partialorder %v1345, 20.0
    %vm1516 = vcmp.gt.f32.partialorder %v1350, 20.0
    %vm1517 = vcmp.gt.f32.partialorder %v1355, 20.0
    %v1518 = vsel %vm1502, %v1280, %v1486
    %v1519 = vsel %vm1503, %v1285, %v1487
    %v1520 = vsel %vm1504, %v1290, %v1488
    %v1521 = vsel %vm1505, %v1295, %v1489
    %v1522 = vsel %vm1506, %v1300, %v1490
    %v1523 = vsel %vm1507, %v1305, %v1491
    %v1524 = vsel %vm1508, %v1310, %v1492
    %v1525 = vsel %vm1509, %v1315, %v1493
    %v1526 = vsel %vm1510, %v1320, %v1494
    %v1527 = vsel %vm1511, %v1325, %v1495
    %v1528 = vsel %vm1512, %v1330, %v1496
    %v1529 = vsel %vm1513, %v1335, %v1497
    %v1530 = vsel %vm1514, %v1340, %v1498
    %v1531 = vsel %vm1515, %v1345, %v1499
    %v1532 = vsel %vm1516, %v1350, %v1500
    %v1533 = vsel %vm1517, %v1355, %v1501
    %s1534 = scalar_lea.vmem [#allocation2], 384
    %v1535 = vld [vmem:[%s1534] sm:$0xff]
    %v1536 = vld [vmem:[%s1534 + $0x8] sm:$0xff]
    %v1537 = vld [vmem:[%s1534 + $0x10] sm:$0xff]
    %v1538 = vld [vmem:[%s1534 + $0x18] sm:$0xff]
    %v1539 = vld [vmem:[%s1534 + $0x20] sm:$0xff]
    %v1540 = vld [vmem:[%s1534 + $0x28] sm:$0xff]
    %v1541 = vld [vmem:[%s1534 + $0x30] sm:$0xff]
    %v1542 = vld [vmem:[%s1534 + $0x38] sm:$0xff]
    %v1543 = vld [vmem:[%s1534 + $0x40] sm:$0xff]
    %v1544 = vld [vmem:[%s1534 + $0x48] sm:$0xff]
    %v1545 = vld [vmem:[%s1534 + $0x50] sm:$0xff]
    %v1546 = vld [vmem:[%s1534 + $0x58] sm:$0xff]
    %v1547 = vld [vmem:[%s1534 + $0x60] sm:$0xff]
    %v1548 = vld [vmem:[%s1534 + $0x68] sm:$0xff]
    %v1549 = vld [vmem:[%s1534 + $0x70] sm:$0xff]
    %v1550 = vld [vmem:[%s1534 + $0x78] sm:$0xff]
    %1551 = vmatprep.subr.mxu0 0.0
    %1552 = vmatpush1.msra.mxu0 %v1535
    %1553 = vmatprep.subr.mxu0 0.0
    %1554 = vmatpush1.msra.mxu0 %v1536
    %1555 = vmatprep.subr.mxu0 0.0
    %1556 = vmatpush1.msra.mxu0 %v1537
    %1557 = vmatprep.subr.mxu0 0.0
    %1558 = vmatpush1.msra.mxu0 %v1538
    %1559 = vmatprep.subr.mxu0 0.0
    %1560 = vmatpush1.msra.mxu0 %v1539
    %1561 = vmatprep.subr.mxu0 0.0
    %1562 = vmatpush1.msra.mxu0 %v1540
    %1563 = vmatprep.subr.mxu0 0.0
    %1564 = vmatpush1.msra.mxu0 %v1541
    %1565 = vmatprep.subr.mxu0 0.0
    %1566 = vmatpush1.msra.mxu0 %v1542
    %1567 = vmatprep.subr.mxu0 0.0
    %1568 = vmatpush1.msra.mxu0 %v1543
    %1569 = vmatprep.subr.mxu0 0.0
    %1570 = vmatpush1.msra.mxu0 %v1544
    %1571 = vmatprep.subr.mxu0 0.0
    %1572 = vmatpush1.msra.mxu0 %v1545
    %1573 = vmatprep.subr.mxu0 0.0
    %1574 = vmatpush1.msra.mxu0 %v1546
    %1575 = vmatprep.subr.mxu0 0.0
    %1576 = vmatpush1.msra.mxu0 %v1547
    %1577 = vmatprep.subr.mxu0 0.0
    %1578 = vmatpush1.msra.mxu0 %v1548
    %1579 = vmatprep.subr.mxu0 0.0
    %1580 = vmatpush1.msra.mxu0 %v1549
    %1581 = vmatprep.subr.mxu0 0.0
    %1582 = vmatpush1.msra.mxu0 %v1550
    %1583 = vmatprep.subr.mxu0 0.0
    %1584 = vmatpush1.msra.mxu0 0.0
    %1585 = vmatprep.subr.mxu0 0.0
    %1586 = vmatpush1.msra.mxu0 0.0
    %1587 = vmatprep.subr.mxu0 0.0
    %1588 = vmatpush1.msra.mxu0 0.0
    %1589 = vmatprep.subr.mxu0 0.0
    %1590 = vmatpush1.msra.mxu0 0.0
    %1591 = vmatprep.subr.mxu0 0.0
    %1592 = vmatpush1.msra.mxu0 0.0
    %1593 = vmatprep.subr.mxu0 0.0
    %1594 = vmatpush1.msra.mxu0 0.0
    %1595 = vmatprep.subr.mxu0 0.0
    %1596 = vmatpush1.msra.mxu0 0.0
    %1597 = vmatprep.subr.mxu0 0.0
    %1598 = vmatpush1.msra.mxu0 0.0
    %1599 = vmatprep.subr.mxu0 0.0
    %1600 = vmatpush1.msra.mxu0 0.0
    %1601 = vmatprep.subr.mxu0 0.0
    %1602 = vmatpush1.msra.mxu0 0.0
    %1603 = vmatprep.subr.mxu0 0.0
    %1604 = vmatpush1.msra.mxu0 0.0
    %1605 = vmatprep.subr.mxu0 0.0
    %1606 = vmatpush1.msra.mxu0 0.0
    %1607 = vmatprep.subr.mxu0 0.0
    %1608 = vmatpush1.msra.mxu0 0.0
    %1609 = vmatprep.subr.mxu0 0.0
    %1610 = vmatpush1.msra.mxu0 0.0
    %1611 = vmatprep.subr.mxu0 0.0
    %1612 = vmatpush1.msra.mxu0 0.0
    %1613 = vmatprep.subr.mxu0 0.0
    %1614 = vmatpush1.msra.mxu0 0.0
    %1615 = vmatprep.mubr.f32.mxu0 0.0
    %1616 = vmatmul.mubr.f32.gmra.mrb[0].mxu0 %v1518
    %v1617 = vpop.f32.mrb[0].mxu0
    %v1618 = vadd.f32 0.0, %v1617
    %v1619 = vpop.f32.mrb[0].mxu0
    %1620 = vmatprep.mubr.f32.mxu0 0.0
    %1621 = vmatmul.mubr.f32.gmra.mrb[0].mxu0 %v1519
    %v1622 = vpop.f32.mrb[0].mxu0
    %v1623 = vadd.f32 0.0, %v1622
    %v1624 = vpop.f32.mrb[0].mxu0
    %1625 = vmatprep.mubr.f32.mxu0 0.0
    %1626 = vmatmul.mubr.f32.gmra.mrb[0].mxu0 %v1520
    %v1627 = vpop.f32.mrb[0].mxu0
    %v1628 = vadd.f32 0.0, %v1627
    %v1629 = vpop.f32.mrb[0].mxu0
    %1630 = vmatprep.mubr.f32.mxu0 0.0
    %1631 = vmatmul.mubr.f32.gmra.mrb[0].mxu0 %v1521
    %v1632 = vpop.f32.mrb[0].mxu0
    %v1633 = vadd.f32 0.0, %v1632
    %v1634 = vpop.f32.mrb[0].mxu0
    %1635 = vmatprep.mubr.f32.mxu0 0.0
    %1636 = vmatmul.mubr.f32.gmra.mrb[0].mxu0 %v1522
    %v1637 = vpop.f32.mrb[0].mxu0
    %v1638 = vadd.f32 0.0, %v1637
    %v1639 = vpop.f32.mrb[0].mxu0
    %1640 = vmatprep.mubr.f32.mxu0 0.0
    %1641 = vmatmul.mubr.f32.gmra.mrb[0].mxu0 %v1523
    %v1642 = vpop.f32.mrb[0].mxu0
    %v1643 = vadd.f32 0.0, %v1642
    %v1644 = vpop.f32.mrb[0].mxu0
    %1645 = vmatprep.mubr.f32.mxu0 0.0
    %1646 = vmatmul.mubr.f32.gmra.mrb[0].mxu0 %v1524
    %v1647 = vpop.f32.mrb[0].mxu0
    %v1648 = vadd.f32 0.0, %v1647
    %v1649 = vpop.f32.mrb[0].mxu0
    %1650 = vmatprep.mubr.f32.mxu0 0.0
    %1651 = vmatmul.mubr.f32.gmra.mrb[0].mxu0 %v1525
    %v1652 = vpop.f32.mrb[0].mxu0
    %v1653 = vadd.f32 0.0, %v1652
    %v1654 = vpop.f32.mrb[0].mxu0
    %1655 = vmatprep.mubr.f32.mxu0 0.0
    %1656 = vmatmul.mubr.f32.gmra.mrb[0].mxu0 %v1526
    %v1657 = vpop.f32.mrb[0].mxu0
    %v1658 = vadd.f32 0.0, %v1657
    %v1659 = vpop.f32.mrb[0].mxu0
    %1660 = vmatprep.mubr.f32.mxu0 0.0
    %1661 = vmatmul.mubr.f32.gmra.mrb[0].mxu0 %v1527
    %v1662 = vpop.f32.mrb[0].mxu0
    %v1663 = vadd.f32 0.0, %v1662
    %v1664 = vpop.f32.mrb[0].mxu0
    %1665 = vmatprep.mubr.f32.mxu0 0.0
    %1666 = vmatmul.mubr.f32.gmra.mrb[0].mxu0 %v1528
    %v1667 = vpop.f32.mrb[0].mxu0
    %v1668 = vadd.f32 0.0, %v1667
    %v1669 = vpop.f32.mrb[0].mxu0
    %1670 = vmatprep.mubr.f32.mxu0 0.0
    %1671 = vmatmul.mubr.f32.gmra.mrb[0].mxu0 %v1529
    %v1672 = vpop.f32.mrb[0].mxu0
    %v1673 = vadd.f32 0.0, %v1672
    %v1674 = vpop.f32.mrb[0].mxu0
    %1675 = vmatprep.mubr.f32.mxu0 0.0
    %1676 = vmatmul.mubr.f32.gmra.mrb[0].mxu0 %v1530
    %v1677 = vpop.f32.mrb[0].mxu0
    %v1678 = vadd.f32 0.0, %v1677
    %v1679 = vpop.f32.mrb[0].mxu0
    %1680 = vmatprep.mubr.f32.mxu0 0.0
    %1681 = vmatmul.mubr.f32.gmra.mrb[0].mxu0 %v1531
    %v1682 = vpop.f32.mrb[0].mxu0
    %v1683 = vadd.f32 0.0, %v1682
    %v1684 = vpop.f32.mrb[0].mxu0
    %1685 = vmatprep.mubr.f32.mxu0 0.0
    %1686 = vmatmul.mubr.f32.gmra.mrb[0].mxu0 %v1532
    %v1687 = vpop.f32.mrb[0].mxu0
    %v1688 = vadd.f32 0.0, %v1687
    %v1689 = vpop.f32.mrb[0].mxu0
    %1690 = vmatprep.mubr.f32.mxu0 0.0
    %1691 = vmatmul.mubr.f32.gmra.mrb[0].mxu0 %v1533
    %v1692 = vpop.f32.mrb[0].mxu0
    %v1693 = vadd.f32 0.0, %v1692
    %v1694 = vpop.f32.mrb[0].mxu0
    %1695 = vdwg.mxu0
    %s1696 = scalar_lea.vmem %s3, 3
    %v1697 = vld [vmem:[%s1696] sm:$0x1]
    %v1699 = vlaneseq
    %v1700 = vshrl.u32 %v1699, 7
    %v1701 = vsub.s32 0, %v1700
    %v1702 = vrot.slane %v1697, %v1701
    %1704 = vmatprep.subr.mxu0 0.0
    %1705 = vmatpush1.msra.mxu0 %v1618
    %1706 = vmatprep.subr.mxu0 0.0
    %1707 = vmatpush1.msra.mxu0 %v1623
    %1708 = vmatprep.subr.mxu0 0.0
    %1709 = vmatpush1.msra.mxu0 %v1628
    %1710 = vmatprep.subr.mxu0 0.0
    %1711 = vmatpush1.msra.mxu0 %v1633
    %1712 = vmatprep.subr.mxu0 0.0
    %1713 = vmatpush1.msra.mxu0 %v1638
    %1714 = vmatprep.subr.mxu0 0.0
    %1715 = vmatpush1.msra.mxu0 %v1643
    %1716 = vmatprep.subr.mxu0 0.0
    %1717 = vmatpush1.msra.mxu0 %v1648
    %1718 = vmatprep.subr.mxu0 0.0
    %1719 = vmatpush1.msra.mxu0 %v1653
    %1720 = vmatprep.subr.mxu0 0.0
    %1721 = vmatpush1.msra.mxu0 %v1658
    %1722 = vmatprep.subr.mxu0 0.0
    %1723 = vmatpush1.msra.mxu0 %v1663
    %1724 = vmatprep.subr.mxu0 0.0
    %1725 = vmatpush1.msra.mxu0 %v1668
    %1726 = vmatprep.subr.mxu0 0.0
    %1727 = vmatpush1.msra.mxu0 %v1673
    %1728 = vmatprep.subr.mxu0 0.0
    %1729 = vmatpush1.msra.mxu0 %v1678
    %1730 = vmatprep.subr.mxu0 0.0
    %1731 = vmatpush1.msra.mxu0 %v1683
    %1732 = vmatprep.subr.mxu0 0.0
    %1733 = vmatpush1.msra.mxu0 %v1688
    %1734 = vmatprep.subr.mxu0 0.0
    %1735 = vmatpush1.msra.mxu0 %v1693
    %1736 = vmatprep.subr.mxu0 0.0
    %1737 = vmatpush1.msra.mxu0 0.0
    %1738 = vmatprep.subr.mxu0 0.0
    %1739 = vmatpush1.msra.mxu0 0.0
    %1740 = vmatprep.subr.mxu0 0.0
    %1741 = vmatpush1.msra.mxu0 0.0
    %1742 = vmatprep.subr.mxu0 0.0
    %1743 = vmatpush1.msra.mxu0 0.0
    %1744 = vmatprep.subr.mxu0 0.0
    %1745 = vmatpush1.msra.mxu0 0.0
    %1746 = vmatprep.subr.mxu0 0.0
    %1747 = vmatpush1.msra.mxu0 0.0
    %1748 = vmatprep.subr.mxu0 0.0
    %1749 = vmatpush1.msra.mxu0 0.0
    %1750 = vmatprep.subr.mxu0 0.0
    %1751 = vmatpush1.msra.mxu0 0.0
    %1752 = vmatprep.subr.mxu0 0.0
    %1753 = vmatpush1.msra.mxu0 0.0
    %1754 = vmatprep.subr.mxu0 0.0
    %1755 = vmatpush1.msra.mxu0 0.0
    %1756 = vmatprep.subr.mxu0 0.0
    %1757 = vmatpush1.msra.mxu0 0.0
    %1758 = vmatprep.subr.mxu0 0.0
    %1759 = vmatpush1.msra.mxu0 0.0
    %1760 = vmatprep.subr.mxu0 0.0
    %1761 = vmatpush1.msra.mxu0 0.0
    %1762 = vmatprep.subr.mxu0 0.0
    %1763 = vmatpush1.msra.mxu0 0.0
    %1764 = vmatprep.subr.mxu0 0.0
    %1765 = vmatpush1.msra.mxu0 0.0
    %1766 = vmatprep.subr.mxu0 0.0
    %1767 = vmatpush1.msra.mxu0 0.0
    %1768 = vmatprep.mubr.f32.mxu0 0.0
    %1769 = vmatmul.mubr.f32.gmra.mrb[0].mxu0 %v31
    %v1770 = vpop.f32.mrb[0].mxu0
    %v1771 = vadd.f32 %v1702, %v1770
    %v1772 = vpop.f32.mrb[0].mxu0
    %1773 = vmatprep.mubr.f32.mxu0 0.0
    %1774 = vmatmul.mubr.f32.gmra.mrb[0].mxu0 %v32
    %v1775 = vpop.f32.mrb[0].mxu0
    %v1776 = vadd.f32 %v1702, %v1775
    %v1777 = vpop.f32.mrb[0].mxu0
    %1778 = vmatprep.mubr.f32.mxu0 0.0
    %1779 = vmatmul.mubr.f32.gmra.mrb[0].mxu0 %v33
    %v1780 = vpop.f32.mrb[0].mxu0
    %v1781 = vadd.f32 %v1702, %v1780
    %v1782 = vpop.f32.mrb[0].mxu0
    %1783 = vmatprep.mubr.f32.mxu0 0.0
    %1784 = vmatmul.mubr.f32.gmra.mrb[0].mxu0 %v34
    %v1785 = vpop.f32.mrb[0].mxu0
    %v1786 = vadd.f32 %v1702, %v1785
    %v1787 = vpop.f32.mrb[0].mxu0
    %1788 = vmatprep.mubr.f32.mxu0 0.0
    %1789 = vmatmul.mubr.f32.gmra.mrb[0].mxu0 %v35
    %v1790 = vpop.f32.mrb[0].mxu0
    %v1791 = vadd.f32 %v1702, %v1790
    %v1792 = vpop.f32.mrb[0].mxu0
    %1793 = vmatprep.mubr.f32.mxu0 0.0
    %1794 = vmatmul.mubr.f32.gmra.mrb[0].mxu0 %v36
    %v1795 = vpop.f32.mrb[0].mxu0
    %v1796 = vadd.f32 %v1702, %v1795
    %v1797 = vpop.f32.mrb[0].mxu0
    %1798 = vmatprep.mubr.f32.mxu0 0.0
    %1799 = vmatmul.mubr.f32.gmra.mrb[0].mxu0 %v37
    %v1800 = vpop.f32.mrb[0].mxu0
    %v1801 = vadd.f32 %v1702, %v1800
    %v1802 = vpop.f32.mrb[0].mxu0
    %1803 = vmatprep.mubr.f32.mxu0 0.0
    %1804 = vmatmul.mubr.f32.gmra.mrb[0].mxu0 %v38
    %v1805 = vpop.f32.mrb[0].mxu0
    %v1806 = vadd.f32 %v1702, %v1805
    %v1807 = vpop.f32.mrb[0].mxu0
    %1808 = vmatprep.mubr.f32.mxu0 0.0
    %1809 = vmatmul.mubr.f32.gmra.mrb[0].mxu0 %v39
    %v1810 = vpop.f32.mrb[0].mxu0
    %v1811 = vadd.f32 %v1702, %v1810
    %v1812 = vpop.f32.mrb[0].mxu0
    %1813 = vmatprep.mubr.f32.mxu0 0.0
    %1814 = vmatmul.mubr.f32.gmra.mrb[0].mxu0 %v40
    %v1815 = vpop.f32.mrb[0].mxu0
    %v1816 = vadd.f32 %v1702, %v1815
    %v1817 = vpop.f32.mrb[0].mxu0
    %1818 = vmatprep.mubr.f32.mxu0 0.0
    %1819 = vmatmul.mubr.f32.gmra.mrb[0].mxu0 %v41
    %v1820 = vpop.f32.mrb[0].mxu0
    %v1821 = vadd.f32 %v1702, %v1820
    %v1822 = vpop.f32.mrb[0].mxu0
    %1823 = vmatprep.mubr.f32.mxu0 0.0
    %1824 = vmatmul.mubr.f32.gmra.mrb[0].mxu0 %v42
    %v1825 = vpop.f32.mrb[0].mxu0
    %v1826 = vadd.f32 %v1702, %v1825
    %v1827 = vpop.f32.mrb[0].mxu0
    %1828 = vmatprep.mubr.f32.mxu0 0.0
    %1829 = vmatmul.mubr.f32.gmra.mrb[0].mxu0 %v43
    %v1830 = vpop.f32.mrb[0].mxu0
    %v1831 = vadd.f32 %v1702, %v1830
    %v1832 = vpop.f32.mrb[0].mxu0
    %1833 = vmatprep.mubr.f32.mxu0 0.0
    %1834 = vmatmul.mubr.f32.gmra.mrb[0].mxu0 %v44
    %v1835 = vpop.f32.mrb[0].mxu0
    %v1836 = vadd.f32 %v1702, %v1835
    %v1837 = vpop.f32.mrb[0].mxu0
    %1838 = vmatprep.mubr.f32.mxu0 0.0
    %1839 = vmatmul.mubr.f32.gmra.mrb[0].mxu0 %v45
    %v1840 = vpop.f32.mrb[0].mxu0
    %v1841 = vadd.f32 %v1702, %v1840
    %v1842 = vpop.f32.mrb[0].mxu0
    %1843 = vmatprep.mubr.f32.mxu0 0.0
    %1844 = vmatmul.mubr.f32.gmra.mrb[0].mxu0 %v46
    %v1845 = vpop.f32.mrb[0].mxu0
    %v1846 = vadd.f32 %v1702, %v1845
    %v1847 = vpop.f32.mrb[0].mxu0
    %1848 = vdwg.mxu0
    %1849 = vst [vmem:[%s4] sm:$0xff] %v1771
    %1850 = vst [vmem:[%s4 + $0x8] sm:$0xff] %v1776
    %1851 = vst [vmem:[%s4 + $0x10] sm:$0xff] %v1781
    %1852 = vst [vmem:[%s4 + $0x18] sm:$0xff] %v1786
    %1853 = vst [vmem:[%s4 + $0x20] sm:$0xff] %v1791
    %1854 = vst [vmem:[%s4 + $0x28] sm:$0xff] %v1796
    %1855 = vst [vmem:[%s4 + $0x30] sm:$0xff] %v1801
    %1856 = vst [vmem:[%s4 + $0x38] sm:$0xff] %v1806
    %1857 = vst [vmem:[%s4 + $0x40] sm:$0xff] %v1811
    %1858 = vst [vmem:[%s4 + $0x48] sm:$0xff] %v1816
    %1859 = vst [vmem:[%s4 + $0x50] sm:$0xff] %v1821
    %1860 = vst [vmem:[%s4 + $0x58] sm:$0xff] %v1826
    %1861 = vst [vmem:[%s4 + $0x60] sm:$0xff] %v1831
    %1862 = vst [vmem:[%s4 + $0x68] sm:$0xff] %v1836
    %1863 = vst [vmem:[%s4 + $0x70] sm:$0xff] %v1841
    %1864 = vst [vmem:[%s4 + $0x78] sm:$0xff] %v1846
    // Predicated region
    $region22: #{gcn_forward.1} parent=1 // pred_check
      _
    $region23: #{gcn_forward.1} parent=1 // pred_check_branch
      %1866 = sbr.rel (0) target = $region25
    $region24: #{gcn_forward.1} parent=1 // pred_region
      _
    $region25: #{gcn_forward.1} parent=1 // pred_fallthru
      _
    // Predicated region
    $region26: #{gcn_forward.1} parent=1 // pred_check
      _
    $region27: #{gcn_forward.1} parent=1 // pred_check_branch
      %1868 = sbr.rel (0) target = $region29
    $region28: #{gcn_forward.1} parent=1 // pred_region
      _
    $region29: #{gcn_forward.1} parent=1 // pred_fallthru
      _
    %1869 = vsyncpa [#allocation3], 1

</llo_original>
